<compile_context>
chip_gen: v6e
topology: v6e:2x2x1
jax: 0.10.0
libtpu: 0.0.40
codegen_flags: <defaults>
</compile_context>

<pallas_src>
import jax
import jax.numpy as jnp
from jax.experimental import pallas as pl
from jax.experimental.pallas import tpu as pltpu


def _softplus(x):
    # Numerically stable softplus (torch.nn.Softplus, beta=1), f32 compute.
    return jnp.maximum(x, 0.0) + jnp.log1p(jnp.exp(-jnp.abs(x)))


def odenet_kernel(t_ref,
                  x_ref,
                  w0_ref, wt0_ref, b0_ref,
                  w1_ref, wt1_ref, b1_ref,
                  w2_ref, wt2_ref, b2_ref,
                  o_ref):
    """Fused 3-layer concat-MLP for one (features, batch_tile) slab.

    t_ref : (1,)          f32 SMEM   scalar time (scalar prefetch)
    x_ref : (D, block_b)  f32        activations, batch on lanes
    wL    : (outL, inL)   bf16       weight (pre-transposed) — bf16 MXU operand
    wtL   : (outL, 1)     f32        time column
    bL    : (outL, 1)     f32        bias
    o_ref : (D, block_b)  f32
    """
    t = t_ref[0]                                    # f32 scalar from SMEM

    x = x_ref[...].astype(jnp.bfloat16)             # (D, Bt) bf16 MXU operand

    # Layer 0: (H0, D) @ (D, Bt) + (t*wt + b), softplus — accumulate in f32.
    h = jnp.dot(w0_ref[...], x, preferred_element_type=jnp.float32)
    h = _softplus(h + (t * wt0_ref[...] + b0_ref[...]))

    # Layer 1: (H1, H0) @ (H0, Bt) + (t*wt + b), softplus.
    h = jnp.dot(w1_ref[...], h.astype(jnp.bfloat16),
                preferred_element_type=jnp.float32)
    h = _softplus(h + (t * wt1_ref[...] + b1_ref[...]))

    # Layer 2: (D, H1) @ (H1, Bt) + (t*wt + b), no activation on last layer.
    h = jnp.dot(w2_ref[...], h.astype(jnp.bfloat16),
                preferred_element_type=jnp.float32)
    h = h + (t * wt2_ref[...] + b2_ref[...])

    o_ref[...] = h.astype(o_ref.dtype)              # lane-dense store


def _pick_block_b(B, min_grid_steps=2):
    """Largest lane-dense batch tile that still leaves >= min_grid_steps grid
    steps (so the 'parallel' axis spans both TensorCores on v7x); falls back
    to the largest dividing tile when the batch is too small for that."""
    if B % 128 != 0:
        raise ValueError(
            f"batch={B} must be a multiple of 128 for the lane-dense layout")
    fallback = None
    for cand in (2048, 1024, 512, 256, 128):
        if B % cand == 0:
            if fallback is None:
                fallback = cand
            if B // cand >= min_grid_steps:
                return cand
    return fallback


def odenet_forward_dbt(t, x_dbt, params, *, block_b=None):
    """Core kernel call on the batch-on-lanes layout (use this in the solver).

    x_dbt : (D, B) f32 activations (batch on lanes).  Returns (D, B), same dtype.
    params: list of (W (out,in), w_t (out,1), b (out,1)) per layer.
            W should be bf16 (cast once at init); w_t/b stay f32.
    """
    D, B = x_dbt.shape
    if block_b is None:
        block_b = _pick_block_b(B)
    assert block_b % 128 == 0, "block_b must be a multiple of 128 (lane width)"
    assert B % block_b == 0, "batch must be divisible by block_b"

    (w0, wt0, b0), (w1, wt1, b1), (w2, wt2, b2) = params
    H0, H1 = w0.shape[0], w1.shape[0]
    assert w0.shape == (H0, D) and w1.shape == (H1, H0) and w2.shape == (D, H1)

    # MXU operands in bf16 (identity if already bf16); bias path stays f32.
    w0, w1, w2 = (w.astype(jnp.bfloat16) for w in (w0, w1, w2))
    wt0, b0, wt1, b1, wt2, b2 = (
        a.astype(jnp.float32) for a in (wt0, b0, wt1, b1, wt2, b2))

    t_arr = jnp.asarray(t, dtype=jnp.float32).reshape((1,))

    # Small resident operands: constant index map -> loaded once, not re-DMA'd.
    resident = lambda shp: pl.BlockSpec(shp, lambda i, t_ref: (0, 0))

    grid_spec = pltpu.PrefetchScalarGridSpec(
        num_scalar_prefetch=1,                       # t lives in SMEM
        grid=(B // block_b,),
        in_specs=[
            pl.BlockSpec((D, block_b), lambda i, t_ref: (0, i)),   # activations
            resident(w0.shape), resident(wt0.shape), resident(b0.shape),
            resident(w1.shape), resident(wt1.shape), resident(b1.shape),
            resident(w2.shape), resident(wt2.shape), resident(b2.shape),
        ],
        out_specs=pl.BlockSpec((D, block_b), lambda i, t_ref: (0, i)),
    )

    bytes_io = 2 * B * D * x_dbt.dtype.itemsize
    bytes_w = sum(int(a.size) * a.dtype.itemsize
                  for a in (w0, wt0, b0, w1, wt1, b1, w2, wt2, b2))
    cost = pl.CostEstimate(
        flops=2 * B * (D * H0 + H0 * H1 + H1 * D),
        transcendentals=2 * B * (H0 + H1),           # exp + log1p per hidden elem
        bytes_accessed=bytes_io + bytes_w,
    )

    return pl.pallas_call(
        odenet_kernel,
        out_shape=jax.ShapeDtypeStruct((D, B), x_dbt.dtype),
        grid_spec=grid_spec,
        compiler_params=pltpu.CompilerParams(
            dimension_semantics=("parallel",)),       # shards across TCs on v7x
        cost_estimate=cost,
    )(t_arr, x_dbt, w0, wt0, b0, w1, wt1, b1, w2, wt2, b2)


def odenet_forward(t, y, params, *, block_b=None):
    """Convenience wrapper matching ODEnet.forward(t, y): y is (B, D).

    In a real FFJORD solver keep the state in the (D, B) f32 layout between
    steps and call `odenet_forward_dbt` directly; the transposes here are
    layout plumbing for the PyTorch-shaped interface.
    """
    x_dbt = jnp.transpose(y)                         # (D, B), dtype preserved
    out_dbt = odenet_forward_dbt(t, x_dbt, params, block_b=block_b)
    return jnp.transpose(out_dbt)                    # (B, D), dtype preserved


def odenet_reference(t, y, params):
    """Pure-JAX reference of the same forward (ConcatLinear + softplus), f32."""
    h = y.astype(jnp.float32)
    n = len(params)
    for l, (w, wt, b) in enumerate(params):
        h = h @ w.astype(jnp.float32).T + (t * wt + b).reshape(1, -1)
        if l < n - 1:
            h = _softplus(h)
    return h


def init_params(key, input_dim, hidden_dims):
    """Synthetic weights, stored transposed: W (out,in) bf16 (prepared once for
    the MXU), w_t (out,1) f32, b (out,1) f32."""
    dims_in = (input_dim,) + tuple(hidden_dims)
    dims_out = tuple(hidden_dims) + (input_dim,)
    params = []
    for din, dout in zip(dims_in, dims_out):
        key, k1, k2, k3 = jax.random.split(key, 4)
        w_x = (jax.random.normal(k1, (dout, din), jnp.float32) * 0.1
               ).astype(jnp.bfloat16)
        w_t = jax.random.normal(k2, (dout, 1), jnp.float32) * 0.1
        b = jax.random.normal(k3, (dout, 1), jnp.float32) * 0.1
        params.append((w_x, w_t, b))
    return params


if __name__ == "__main__":
    key = jax.random.PRNGKey(0)
    k_y, k_p = jax.random.split(key)

    B, D = 1024, 16              # batch, input_dim
    hidden_dims = (32, 32)

    y = jax.random.normal(k_y, (B, D), jnp.float32)
    t = jnp.float32(0.5)
    params = init_params(k_p, D, hidden_dims)

    # block_b auto-picked: 512 -> 2 parallel grid steps (both TCs on v7x).
    out = odenet_forward(t, y, params)
    out = jax.block_until_ready(out)

    ref = odenet_reference(t, y, params)

    assert out.shape == y.shape, (out.shape, y.shape)
    assert out.dtype == y.dtype, (out.dtype, y.dtype)   # state stays f32
    assert jnp.allclose(out.astype(jnp.float32), ref, atol=2e-2, rtol=2e-2), \
        "mismatch vs reference"

    print("KERNEL_OK")
</pallas_src>

<mosaic_0001>
module attributes {stable_mosaic.version = 11 : i64} {
  func.func @odenet_kernel(%arg0: i32, %arg1: memref<1xf32, #tpu.memory_space<smem>>, %arg2: memref<16x512xf32, #tpu.memory_space<vmem>>, %arg3: memref<32x16xbf16, #tpu.memory_space<vmem>>, %arg4: memref<32x1xf32, #tpu.memory_space<vmem>>, %arg5: memref<32x1xf32, #tpu.memory_space<vmem>>, %arg6: memref<32x32xbf16, #tpu.memory_space<vmem>>, %arg7: memref<32x1xf32, #tpu.memory_space<vmem>>, %arg8: memref<32x1xf32, #tpu.memory_space<vmem>>, %arg9: memref<16x32xbf16, #tpu.memory_space<vmem>>, %arg10: memref<16x1xf32, #tpu.memory_space<vmem>>, %arg11: memref<16x1xf32, #tpu.memory_space<vmem>>, %arg12: memref<16x512xf32, #tpu.memory_space<vmem>>) attributes {dimension_semantics = [#tpu.dimension_semantics<parallel>], iteration_bounds = array<i64: 2>, scalar_prefetch = 1 : i64, scratch_operands = 0 : i64, tpu.core_type = #tpu.core_type<tc>, window_params = [{transform_indices = @transform_0, window_bounds = array<i64: 16, 512>}, {pipeline_mode = #tpu.pipeline_mode<synchronous>, transform_indices = @transform_1, window_bounds = array<i64: 32, 16>}, {pipeline_mode = #tpu.pipeline_mode<synchronous>, transform_indices = @transform_2, window_bounds = array<i64: 32, 1>}, {pipeline_mode = #tpu.pipeline_mode<synchronous>, transform_indices = @transform_3, window_bounds = array<i64: 32, 1>}, {pipeline_mode = #tpu.pipeline_mode<synchronous>, transform_indices = @transform_4, window_bounds = array<i64: 32, 32>}, {pipeline_mode = #tpu.pipeline_mode<synchronous>, transform_indices = @transform_5, window_bounds = array<i64: 32, 1>}, {pipeline_mode = #tpu.pipeline_mode<synchronous>, transform_indices = @transform_6, window_bounds = array<i64: 32, 1>}, {pipeline_mode = #tpu.pipeline_mode<synchronous>, transform_indices = @transform_7, window_bounds = array<i64: 16, 32>}, {pipeline_mode = #tpu.pipeline_mode<synchronous>, transform_indices = @transform_8, window_bounds = array<i64: 16, 1>}, {pipeline_mode = #tpu.pipeline_mode<synchronous>, transform_indices = @transform_9, window_bounds = array<i64: 16, 1>}, {transform_indices = @transform_10, window_bounds = array<i64: 16, 512>}]} {
    %c0 = arith.constant 0 : index
    %0 = memref.load %arg1[%c0] : memref<1xf32, #tpu.memory_space<smem>>
    %c0_0 = arith.constant 0 : index
    %c0_1 = arith.constant 0 : index
    %1 = vector.load %arg2[%c0_0, %c0_1] : memref<16x512xf32, #tpu.memory_space<vmem>>, vector<16x512xf32>
    %2 = arith.truncf %1 : vector<16x512xf32> to vector<16x512xbf16>
    %c0_2 = arith.constant 0 : index
    %c0_3 = arith.constant 0 : index
    %3 = vector.load %arg3[%c0_2, %c0_3] : memref<32x16xbf16, #tpu.memory_space<vmem>>, vector<32x16xbf16>
    %cst = arith.constant dense<0.000000e+00> : vector<32x512xf32>
    %4 = tpu.matmul %3, %2, %cst {dimension_numbers = #tpu.dot_dimension_numbers<[1], [0], [0], [1], [0, 0, 1, 1], [], []>} : vector<32x16xbf16>, vector<16x512xbf16>, vector<32x512xf32> -> vector<32x512xf32>
    %c0_4 = arith.constant 0 : index
    %c0_5 = arith.constant 0 : index
    %5 = vector.load %arg4[%c0_4, %c0_5] : memref<32x1xf32, #tpu.memory_space<vmem>>, vector<32x1xf32>
    %6 = vector.broadcast %0 : f32 to vector<32x1xf32>
    %7 = arith.mulf %6, %5 : vector<32x1xf32>
    %c0_6 = arith.constant 0 : index
    %c0_7 = arith.constant 0 : index
    %8 = vector.load %arg5[%c0_6, %c0_7] : memref<32x1xf32, #tpu.memory_space<vmem>>, vector<32x1xf32>
    %9 = arith.addf %7, %8 : vector<32x1xf32>
    %10 = vector.broadcast %9 : vector<32x1xf32> to vector<32x512xf32>
    %11 = arith.addf %4, %10 : vector<32x512xf32>
    %cst_8 = arith.constant 0.000000e+00 : f32
    %12 = vector.broadcast %cst_8 : f32 to vector<32x512xf32>
    %13 = arith.maximumf %11, %12 : vector<32x512xf32>
    %14 = math.absf %11 : vector<32x512xf32>
    %cst_9 = arith.constant 0.000000e+00 : f32
    %15 = vector.broadcast %cst_9 : f32 to vector<32x512xf32>
    %16 = arith.subf %15, %14 : vector<32x512xf32>
    %17 = math.exp %16 : vector<32x512xf32>
    %18 = math.log1p %17 : vector<32x512xf32>
    %19 = arith.addf %13, %18 : vector<32x512xf32>
    %c0_10 = arith.constant 0 : index
    %c0_11 = arith.constant 0 : index
    %20 = vector.load %arg6[%c0_10, %c0_11] : memref<32x32xbf16, #tpu.memory_space<vmem>>, vector<32x32xbf16>
    %21 = arith.truncf %19 : vector<32x512xf32> to vector<32x512xbf16>
    %cst_12 = arith.constant dense<0.000000e+00> : vector<32x512xf32>
    %22 = tpu.matmul %20, %21, %cst_12 {dimension_numbers = #tpu.dot_dimension_numbers<[1], [0], [0], [1], [0, 0, 1, 1], [], []>} : vector<32x32xbf16>, vector<32x512xbf16>, vector<32x512xf32> -> vector<32x512xf32>
    %c0_13 = arith.constant 0 : index
    %c0_14 = arith.constant 0 : index
    %23 = vector.load %arg7[%c0_13, %c0_14] : memref<32x1xf32, #tpu.memory_space<vmem>>, vector<32x1xf32>
    %24 = vector.broadcast %0 : f32 to vector<32x1xf32>
    %25 = arith.mulf %24, %23 : vector<32x1xf32>
    %c0_15 = arith.constant 0 : index
    %c0_16 = arith.constant 0 : index
    %26 = vector.load %arg8[%c0_15, %c0_16] : memref<32x1xf32, #tpu.memory_space<vmem>>, vector<32x1xf32>
    %27 = arith.addf %25, %26 : vector<32x1xf32>
    %28 = vector.broadcast %27 : vector<32x1xf32> to vector<32x512xf32>
    %29 = arith.addf %22, %28 : vector<32x512xf32>
    %cst_17 = arith.constant 0.000000e+00 : f32
    %30 = vector.broadcast %cst_17 : f32 to vector<32x512xf32>
    %31 = arith.maximumf %29, %30 : vector<32x512xf32>
    %32 = math.absf %29 : vector<32x512xf32>
    %cst_18 = arith.constant 0.000000e+00 : f32
    %33 = vector.broadcast %cst_18 : f32 to vector<32x512xf32>
    %34 = arith.subf %33, %32 : vector<32x512xf32>
    %35 = math.exp %34 : vector<32x512xf32>
    %36 = math.log1p %35 : vector<32x512xf32>
    %37 = arith.addf %31, %36 : vector<32x512xf32>
    %c0_19 = arith.constant 0 : index
    %c0_20 = arith.constant 0 : index
    %38 = vector.load %arg9[%c0_19, %c0_20] : memref<16x32xbf16, #tpu.memory_space<vmem>>, vector<16x32xbf16>
    %39 = arith.truncf %37 : vector<32x512xf32> to vector<32x512xbf16>
    %cst_21 = arith.constant dense<0.000000e+00> : vector<16x512xf32>
    %40 = tpu.matmul %38, %39, %cst_21 {dimension_numbers = #tpu.dot_dimension_numbers<[1], [0], [0], [1], [0, 0, 1, 1], [], []>} : vector<16x32xbf16>, vector<32x512xbf16>, vector<16x512xf32> -> vector<16x512xf32>
    %c0_22 = arith.constant 0 : index
    %c0_23 = arith.constant 0 : index
    %41 = vector.load %arg10[%c0_22, %c0_23] : memref<16x1xf32, #tpu.memory_space<vmem>>, vector<16x1xf32>
    %42 = vector.broadcast %0 : f32 to vector<16x1xf32>
    %43 = arith.mulf %42, %41 : vector<16x1xf32>
    %c0_24 = arith.constant 0 : index
    %c0_25 = arith.constant 0 : index
    %44 = vector.load %arg11[%c0_24, %c0_25] : memref<16x1xf32, #tpu.memory_space<vmem>>, vector<16x1xf32>
    %45 = arith.addf %43, %44 : vector<16x1xf32>
    %46 = vector.broadcast %45 : vector<16x1xf32> to vector<16x512xf32>
    %47 = arith.addf %40, %46 : vector<16x512xf32>
    %c0_26 = arith.constant 0 : index
    %c0_27 = arith.constant 0 : index
    %48 = vector.load %arg12[%c0_26, %c0_27] : memref<16x512xf32, #tpu.memory_space<vmem>>, vector<16x512xf32>
    tpu.vector_store %arg12[%c0_26, %c0_27], %47 {strides = array<i32>} : memref<16x512xf32, #tpu.memory_space<vmem>>, vector<16x512xf32>,
    return
  }
  func.func @transform_0(%arg0: i32, %arg1: memref<1xf32, #tpu.memory_space<smem>>) -> (i32, i32) {
    %c0_i32 = arith.constant 0 : i32
    %c0_i32_0 = arith.constant 0 : i32
    return %c0_i32, %arg0 : i32, i32
  }
  func.func @transform_1(%arg0: i32, %arg1: memref<1xf32, #tpu.memory_space<smem>>) -> (i32, i32) {
    %c0_i32 = arith.constant 0 : i32
    %c0_i32_0 = arith.constant 0 : i32
    %c0_i32_1 = arith.constant 0 : i32
    return %c0_i32, %c0_i32_0 : i32, i32
  }
  func.func @transform_2(%arg0: i32, %arg1: memref<1xf32, #tpu.memory_space<smem>>) -> (i32, i32) {
    %c0_i32 = arith.constant 0 : i32
    %c0_i32_0 = arith.constant 0 : i32
    %c0_i32_1 = arith.constant 0 : i32
    return %c0_i32, %c0_i32_0 : i32, i32
  }
  func.func @transform_3(%arg0: i32, %arg1: memref<1xf32, #tpu.memory_space<smem>>) -> (i32, i32) {
    %c0_i32 = arith.constant 0 : i32
    %c0_i32_0 = arith.constant 0 : i32
    %c0_i32_1 = arith.constant 0 : i32
    return %c0_i32, %c0_i32_0 : i32, i32
  }
  func.func @transform_4(%arg0: i32, %arg1: memref<1xf32, #tpu.memory_space<smem>>) -> (i32, i32) {
    %c0_i32 = arith.constant 0 : i32
    %c0_i32_0 = arith.constant 0 : i32
    %c0_i32_1 = arith.constant 0 : i32
    return %c0_i32, %c0_i32_0 : i32, i32
  }
  func.func @transform_5(%arg0: i32, %arg1: memref<1xf32, #tpu.memory_space<smem>>) -> (i32, i32) {
    %c0_i32 = arith.constant 0 : i32
    %c0_i32_0 = arith.constant 0 : i32
    %c0_i32_1 = arith.constant 0 : i32
    return %c0_i32, %c0_i32_0 : i32, i32
  }
  func.func @transform_6(%arg0: i32, %arg1: memref<1xf32, #tpu.memory_space<smem>>) -> (i32, i32) {
    %c0_i32 = arith.constant 0 : i32
    %c0_i32_0 = arith.constant 0 : i32
    %c0_i32_1 = arith.constant 0 : i32
    return %c0_i32, %c0_i32_0 : i32, i32
  }
  func.func @transform_7(%arg0: i32, %arg1: memref<1xf32, #tpu.memory_space<smem>>) -> (i32, i32) {
    %c0_i32 = arith.constant 0 : i32
    %c0_i32_0 = arith.constant 0 : i32
    %c0_i32_1 = arith.constant 0 : i32
    return %c0_i32, %c0_i32_0 : i32, i32
  }
  func.func @transform_8(%arg0: i32, %arg1: memref<1xf32, #tpu.memory_space<smem>>) -> (i32, i32) {
    %c0_i32 = arith.constant 0 : i32
    %c0_i32_0 = arith.constant 0 : i32
    %c0_i32_1 = arith.constant 0 : i32
    return %c0_i32, %c0_i32_0 : i32, i32
  }
  func.func @transform_9(%arg0: i32, %arg1: memref<1xf32, #tpu.memory_space<smem>>) -> (i32, i32) {
    %c0_i32 = arith.constant 0 : i32
    %c0_i32_0 = arith.constant 0 : i32
    %c0_i32_1 = arith.constant 0 : i32
    return %c0_i32, %c0_i32_0 : i32, i32
  }
  func.func @transform_10(%arg0: i32, %arg1: memref<1xf32, #tpu.memory_space<smem>>) -> (i32, i32) {
    %c0_i32 = arith.constant 0 : i32
    %c0_i32_0 = arith.constant 0 : i32
    return %c0_i32, %arg0 : i32, i32
  }
}

</mosaic_0001>

<llo_original>
// kernel: tpu_custom_call.1
$region0: #{tpu_custom_call.1}
  #allocation0 [shape = 'u32[]', space=smem, size = 0x4, offset = 0x4, fixed_abs, tag = 'smem constant byte address 0x4 - core index']
  #allocation1 [shape = 'u32[144,128]{1,0:T(1,128)}', space=vmem, size = 0x12000, scoped, tag = 'internal scratch']
  #allocation2 [shape = 's32[1]{0}', space=sflag, size = 0x4, scoped, tag = 'scoped memory for tpu_custom_call.1']
  #allocation3 [shape = 'f32[1]{0:T(128)S(6)}', space=smem, size = 0x200, scoped, tag = 'prefetched SMEM operand 0']
  %s0 = inlined_call_operand.<no memory space> [shape: f32[1], index: 0, kind: input, shape index: {}]
  %s1 = inlined_call_operand.vmem [shape: f32[16,1024], index: 1, kind: input, shape index: {}]
  %s2 = inlined_call_operand.vmem [shape: bf16[32,16], index: 2, kind: input, shape index: {}]
  %s3 = inlined_call_operand.vmem [shape: f32[32,1], index: 3, kind: input, shape index: {}]
  %s4 = inlined_call_operand.vmem [shape: f32[32,1], index: 4, kind: input, shape index: {}]
  %s5 = inlined_call_operand.vmem [shape: bf16[32,32], index: 5, kind: input, shape index: {}]
  %s6 = inlined_call_operand.vmem [shape: f32[32,1], index: 6, kind: input, shape index: {}]
  %s7 = inlined_call_operand.vmem [shape: f32[32,1], index: 7, kind: input, shape index: {}]
  %s8 = inlined_call_operand.vmem [shape: bf16[16,32], index: 8, kind: input, shape index: {}]
  %s9 = inlined_call_operand.vmem [shape: f32[16,1], index: 9, kind: input, shape index: {}]
  %s10 = inlined_call_operand.vmem [shape: f32[16,1], index: 10, kind: input, shape index: {}]
  %s11 = inlined_call_operand.hbm [shape: f32[16,1024], index: 11, kind: output, shape index: {}]
  %s12 = sld [smem:[#allocation0]]
  $region96: #{tpu_custom_call.1} parent=0
    _
  %s14 = ssub.s32 1, %s12
  %s15 = scalar_select 0, %s14, %s12
  %16 = sst [smem:[#allocation3]] %s0
  $region1: #{tpu_custom_call.1} parent=0
    #allocation4 [shape = 'u8[65536]{0}', space=vmem, size = 0x10000, scoped, tag = 'input window, operand 1']
    #allocation5 [shape = 'u8[65536]{0}', space=vmem, size = 0x10000, scoped, tag = 'output window, operand 0']
    #allocation6 [shape = 's32[2]{0}', space=sflag, size = 0x8, scoped, tag = 'scoped memory for tpu_custom_call.1']
    %17 = vsyncpa [#allocation6], 0
    %s18 = scalar_lea.sflag [#allocation6], 1
    %19 = vsyncpa %s18, 0
    loop: start=0, step=1, limit=4
    $region2: #{tpu_custom_call.1} parent=1 // loop_pre_header
      _
    $region3: #{tpu_custom_call.1} parent=1 // loop_header
      %s21 = sphi 0, %s25
      %p22 = scmp.ge.s32.totalorder %s21, 4
      %s31 = sphi 0, %s33
      %s34 = sphi 0, %s31
      %s35 = sphi 0, %s34
      %s51 = sphi 0, %s35
      %s55 = sphi 0, %s55
      %s57 = sphi 0, %s55
      %s58 = sphi 0, %s57
      %s72 = sphi 0, %s58
      %s76 = sphi 0, %s76
      %s78 = sphi 0, %s76
      %s79 = sphi 0, %s78
      %s93 = sphi 0, %s79
      %s97 = sphi 0, %s97
      %s99 = sphi 0, %s97
      %s100 = sphi 0, %s99
      %s114 = sphi 0, %s100
      %s118 = sphi 0, %s118
      %s120 = sphi 0, %s118
      %s121 = sphi 0, %s120
      %s135 = sphi 0, %s121
      %s139 = sphi 0, %s139
      %s141 = sphi 0, %s139
      %s142 = sphi 0, %s141
      %s156 = sphi 0, %s142
      %s160 = sphi 0, %s160
      %s162 = sphi 0, %s160
      %s163 = sphi 0, %s162
      %s177 = sphi 0, %s163
      %s181 = sphi 0, %s181
      %s183 = sphi 0, %s181
      %s184 = sphi 0, %s183
      %s198 = sphi 0, %s184
      %s202 = sphi 0, %s202
      %s204 = sphi 0, %s202
      %s205 = sphi 0, %s204
      %s219 = sphi 0, %s205
      %s223 = sphi 0, %s223
      %s225 = sphi 0, %s223
      %s226 = sphi 0, %s225
      %s240 = sphi 0, %s226
      %s246 = sphi 0, %s248
      %s249 = sphi 0, %s246
      %s250 = sphi 0, %s249
      %s266 = sphi 0, %s250
    $region4: #{tpu_custom_call.1} parent=1 // loop_header_branch
      %24 = sbr.rel (%p22) target = $region8
    $region5: #{tpu_custom_call.1} parent=1 // loop_body
      %s26 = ssub.s32 %s21, 1
      %s27 = ssub.s32 %s21, 2
      %s28 = sadd.s32 %s21, 1
      %s29 = ssub.s32 %s21, %s28
      %p30 = scmp.eq.s32.totalorder %s29, 0
      %s32 = sadd.s32 %s31, 1
      %s33 = scalar_select %p30, %s31, %s32
      %p36 = pneg %p30
      %p37 = scmp.eq.s32.totalorder %s21, 1
      %p38 = por %p36, %p37
      %p39 = scmp.ne.s32.totalorder %s31, %s34
      %p40 = scmp.eq.s32.totalorder %s21, 0
      %p41 = por %p39, %p40
      %p42 = scmp.ne.s32.totalorder %s31, %s34
      %p43 = scmp.eq.s32.totalorder %s26, 1
      %p44 = por %p42, %p43
      %p45 = scmp.ne.s32.totalorder %s34, %s35
      %p46 = scmp.eq.s32.totalorder %s26, 0
      %p47 = por %p45, %p46
      %p48 = scmp.ne.s32.totalorder %s34, %s35
      %p49 = scmp.eq.s32.totalorder %s27, 1
      %p50 = por %p48, %p49
      %p52 = scmp.ne.s32.totalorder %s35, %s51
      %p53 = scmp.eq.s32.totalorder %s27, 0
      %p54 = por %p52, %p53
      %s56 = sadd.s32 %s55, 1
      %p59 = scmp.eq.s32.totalorder %s21, 1
      %p60 = scmp.ne.s32.totalorder %s55, %s57
      %p61 = scmp.eq.s32.totalorder %s21, 0
      %p62 = por %p60, %p61
      %p63 = scmp.ne.s32.totalorder %s55, %s57
      %p64 = scmp.eq.s32.totalorder %s26, 1
      %p65 = por %p63, %p64
      %p66 = scmp.ne.s32.totalorder %s57, %s58
      %p67 = scmp.eq.s32.totalorder %s26, 0
      %p68 = por %p66, %p67
      %p69 = scmp.ne.s32.totalorder %s57, %s58
      %p70 = scmp.eq.s32.totalorder %s27, 1
      %p71 = por %p69, %p70
      %p73 = scmp.ne.s32.totalorder %s58, %s72
      %p74 = scmp.eq.s32.totalorder %s27, 0
      %p75 = por %p73, %p74
      %s77 = sadd.s32 %s76, 1
      %p80 = scmp.eq.s32.totalorder %s21, 1
      %p81 = scmp.ne.s32.totalorder %s76, %s78
      %p82 = scmp.eq.s32.totalorder %s21, 0
      %p83 = por %p81, %p82
      %p84 = scmp.ne.s32.totalorder %s76, %s78
      %p85 = scmp.eq.s32.totalorder %s26, 1
      %p86 = por %p84, %p85
      %p87 = scmp.ne.s32.totalorder %s78, %s79
      %p88 = scmp.eq.s32.totalorder %s26, 0
      %p89 = por %p87, %p88
      %p90 = scmp.ne.s32.totalorder %s78, %s79
      %p91 = scmp.eq.s32.totalorder %s27, 1
      %p92 = por %p90, %p91
      %p94 = scmp.ne.s32.totalorder %s79, %s93
      %p95 = scmp.eq.s32.totalorder %s27, 0
      %p96 = por %p94, %p95
      %s98 = sadd.s32 %s97, 1
      %p101 = scmp.eq.s32.totalorder %s21, 1
      %p102 = scmp.ne.s32.totalorder %s97, %s99
      %p103 = scmp.eq.s32.totalorder %s21, 0
      %p104 = por %p102, %p103
      %p105 = scmp.ne.s32.totalorder %s97, %s99
      %p106 = scmp.eq.s32.totalorder %s26, 1
      %p107 = por %p105, %p106
      %p108 = scmp.ne.s32.totalorder %s99, %s100
      %p109 = scmp.eq.s32.totalorder %s26, 0
      %p110 = por %p108, %p109
      %p111 = scmp.ne.s32.totalorder %s99, %s100
      %p112 = scmp.eq.s32.totalorder %s27, 1
      %p113 = por %p111, %p112
      %p115 = scmp.ne.s32.totalorder %s100, %s114
      %p116 = scmp.eq.s32.totalorder %s27, 0
      %p117 = por %p115, %p116
      %s119 = sadd.s32 %s118, 1
      %p122 = scmp.eq.s32.totalorder %s21, 1
      %p123 = scmp.ne.s32.totalorder %s118, %s120
      %p124 = scmp.eq.s32.totalorder %s21, 0
      %p125 = por %p123, %p124
      %p126 = scmp.ne.s32.totalorder %s118, %s120
      %p127 = scmp.eq.s32.totalorder %s26, 1
      %p128 = por %p126, %p127
      %p129 = scmp.ne.s32.totalorder %s120, %s121
      %p130 = scmp.eq.s32.totalorder %s26, 0
      %p131 = por %p129, %p130
      %p132 = scmp.ne.s32.totalorder %s120, %s121
      %p133 = scmp.eq.s32.totalorder %s27, 1
      %p134 = por %p132, %p133
      %p136 = scmp.ne.s32.totalorder %s121, %s135
      %p137 = scmp.eq.s32.totalorder %s27, 0
      %p138 = por %p136, %p137
      %s140 = sadd.s32 %s139, 1
      %p143 = scmp.eq.s32.totalorder %s21, 1
      %p144 = scmp.ne.s32.totalorder %s139, %s141
      %p145 = scmp.eq.s32.totalorder %s21, 0
      %p146 = por %p144, %p145
      %p147 = scmp.ne.s32.totalorder %s139, %s141
      %p148 = scmp.eq.s32.totalorder %s26, 1
      %p149 = por %p147, %p148
      %p150 = scmp.ne.s32.totalorder %s141, %s142
      %p151 = scmp.eq.s32.totalorder %s26, 0
      %p152 = por %p150, %p151
      %p153 = scmp.ne.s32.totalorder %s141, %s142
      %p154 = scmp.eq.s32.totalorder %s27, 1
      %p155 = por %p153, %p154
      %p157 = scmp.ne.s32.totalorder %s142, %s156
      %p158 = scmp.eq.s32.totalorder %s27, 0
      %p159 = por %p157, %p158
      %s161 = sadd.s32 %s160, 1
      %p164 = scmp.eq.s32.totalorder %s21, 1
      %p165 = scmp.ne.s32.totalorder %s160, %s162
      %p166 = scmp.eq.s32.totalorder %s21, 0
      %p167 = por %p165, %p166
      %p168 = scmp.ne.s32.totalorder %s160, %s162
      %p169 = scmp.eq.s32.totalorder %s26, 1
      %p170 = por %p168, %p169
      %p171 = scmp.ne.s32.totalorder %s162, %s163
      %p172 = scmp.eq.s32.totalorder %s26, 0
      %p173 = por %p171, %p172
      %p174 = scmp.ne.s32.totalorder %s162, %s163
      %p175 = scmp.eq.s32.totalorder %s27, 1
      %p176 = por %p174, %p175
      %p178 = scmp.ne.s32.totalorder %s163, %s177
      %p179 = scmp.eq.s32.totalorder %s27, 0
      %p180 = por %p178, %p179
      %s182 = sadd.s32 %s181, 1
      %p185 = scmp.eq.s32.totalorder %s21, 1
      %p186 = scmp.ne.s32.totalorder %s181, %s183
      %p187 = scmp.eq.s32.totalorder %s21, 0
      %p188 = por %p186, %p187
      %p189 = scmp.ne.s32.totalorder %s181, %s183
      %p190 = scmp.eq.s32.totalorder %s26, 1
      %p191 = por %p189, %p190
      %p192 = scmp.ne.s32.totalorder %s183, %s184
      %p193 = scmp.eq.s32.totalorder %s26, 0
      %p194 = por %p192, %p193
      %p195 = scmp.ne.s32.totalorder %s183, %s184
      %p196 = scmp.eq.s32.totalorder %s27, 1
      %p197 = por %p195, %p196
      %p199 = scmp.ne.s32.totalorder %s184, %s198
      %p200 = scmp.eq.s32.totalorder %s27, 0
      %p201 = por %p199, %p200
      %s203 = sadd.s32 %s202, 1
      %p206 = scmp.eq.s32.totalorder %s21, 1
      %p207 = scmp.ne.s32.totalorder %s202, %s204
      %p208 = scmp.eq.s32.totalorder %s21, 0
      %p209 = por %p207, %p208
      %p210 = scmp.ne.s32.totalorder %s202, %s204
      %p211 = scmp.eq.s32.totalorder %s26, 1
      %p212 = por %p210, %p211
      %p213 = scmp.ne.s32.totalorder %s204, %s205
      %p214 = scmp.eq.s32.totalorder %s26, 0
      %p215 = por %p213, %p214
      %p216 = scmp.ne.s32.totalorder %s204, %s205
      %p217 = scmp.eq.s32.totalorder %s27, 1
      %p218 = por %p216, %p217
      %p220 = scmp.ne.s32.totalorder %s205, %s219
      %p221 = scmp.eq.s32.totalorder %s27, 0
      %p222 = por %p220, %p221
      %s224 = sadd.s32 %s223, 1
      %p227 = scmp.eq.s32.totalorder %s21, 1
      %p228 = scmp.ne.s32.totalorder %s223, %s225
      %p229 = scmp.eq.s32.totalorder %s21, 0
      %p230 = por %p228, %p229
      %p231 = scmp.ne.s32.totalorder %s223, %s225
      %p232 = scmp.eq.s32.totalorder %s26, 1
      %p233 = por %p231, %p232
      %p234 = scmp.ne.s32.totalorder %s225, %s226
      %p235 = scmp.eq.s32.totalorder %s26, 0
      %p236 = por %p234, %p235
      %p237 = scmp.ne.s32.totalorder %s225, %s226
      %p238 = scmp.eq.s32.totalorder %s27, 1
      %p239 = por %p237, %p238
      %p241 = scmp.ne.s32.totalorder %s226, %s240
      %p242 = scmp.eq.s32.totalorder %s27, 0
      %p243 = por %p241, %p242
      %s244 = ssub.s32 %s21, %s28
      %p245 = scmp.eq.s32.totalorder %s244, 0
      %s247 = sadd.s32 %s246, 1
      %s248 = scalar_select %p245, %s246, %s247
      %p251 = pneg %p245
      %p252 = scmp.eq.s32.totalorder %s21, 1
      %p253 = por %p251, %p252
      %p254 = scmp.ne.s32.totalorder %s246, %s249
      %p255 = scmp.eq.s32.totalorder %s21, 0
      %p256 = por %p254, %p255
      %p257 = scmp.ne.s32.totalorder %s246, %s249
      %p258 = scmp.eq.s32.totalorder %s26, 1
      %p259 = por %p257, %p258
      %p260 = scmp.ne.s32.totalorder %s249, %s250
      %p261 = scmp.eq.s32.totalorder %s26, 0
      %p262 = por %p260, %p261
      %p263 = scmp.ne.s32.totalorder %s249, %s250
      %p264 = scmp.eq.s32.totalorder %s27, 1
      %p265 = por %p263, %p264
      %p267 = scmp.ne.s32.totalorder %s250, %s266
      %p268 = scmp.eq.s32.totalorder %s27, 0
      %p269 = por %p267, %p268
      %p270 = scmp.le.s32.totalorder 1, %s21
      %p271 = scmp.lt.s32.totalorder %s21, 3
      %p272 = pnand %p270, %p271
      %p273 = pneg %p272
      // Predicated region
      $region9: #{tpu_custom_call.1} parent=5 // pred_check
        _
      $region10: #{tpu_custom_call.1} parent=5 // pred_check_branch
        %275 = sbr.rel (%p272) target = $region12
      $region11: #{tpu_custom_call.1} parent=5 // pred_region
        %s276 = ssub.s32 %s21, 1
        // Predicated region
        $region13: #{tpu_custom_call.1} parent=11 // pred_check
          %p277 = pneg %p68
        $region14: #{tpu_custom_call.1} parent=11 // pred_check_branch
          %279 = sbr.rel (%p277) target = $region16
        $region15: #{tpu_custom_call.1} parent=11 // pred_region
          _
        $region16: #{tpu_custom_call.1} parent=11 // pred_fallthru
          _
        // Predicated region
        $region17: #{tpu_custom_call.1} parent=11 // pred_check
          %p280 = pneg %p89
        $region18: #{tpu_custom_call.1} parent=11 // pred_check_branch
          %282 = sbr.rel (%p280) target = $region20
        $region19: #{tpu_custom_call.1} parent=11 // pred_region
          _
        $region20: #{tpu_custom_call.1} parent=11 // pred_fallthru
          _
        // Predicated region
        $region21: #{tpu_custom_call.1} parent=11 // pred_check
          %p283 = pneg %p110
        $region22: #{tpu_custom_call.1} parent=11 // pred_check_branch
          %285 = sbr.rel (%p283) target = $region24
        $region23: #{tpu_custom_call.1} parent=11 // pred_region
          _
        $region24: #{tpu_custom_call.1} parent=11 // pred_fallthru
          _
        // Predicated region
        $region25: #{tpu_custom_call.1} parent=11 // pred_check
          %p286 = pneg %p131
        $region26: #{tpu_custom_call.1} parent=11 // pred_check_branch
          %288 = sbr.rel (%p286) target = $region28
        $region27: #{tpu_custom_call.1} parent=11 // pred_region
          _
        $region28: #{tpu_custom_call.1} parent=11 // pred_fallthru
          _
        // Predicated region
        $region29: #{tpu_custom_call.1} parent=11 // pred_check
          %p289 = pneg %p152
        $region30: #{tpu_custom_call.1} parent=11 // pred_check_branch
          %291 = sbr.rel (%p289) target = $region32
        $region31: #{tpu_custom_call.1} parent=11 // pred_region
          _
        $region32: #{tpu_custom_call.1} parent=11 // pred_fallthru
          _
        // Predicated region
        $region33: #{tpu_custom_call.1} parent=11 // pred_check
          %p292 = pneg %p173
        $region34: #{tpu_custom_call.1} parent=11 // pred_check_branch
          %294 = sbr.rel (%p292) target = $region36
        $region35: #{tpu_custom_call.1} parent=11 // pred_region
          _
        $region36: #{tpu_custom_call.1} parent=11 // pred_fallthru
          _
        // Predicated region
        $region37: #{tpu_custom_call.1} parent=11 // pred_check
          %p295 = pneg %p194
        $region38: #{tpu_custom_call.1} parent=11 // pred_check_branch
          %297 = sbr.rel (%p295) target = $region40
        $region39: #{tpu_custom_call.1} parent=11 // pred_region
          _
        $region40: #{tpu_custom_call.1} parent=11 // pred_fallthru
          _
        // Predicated region
        $region41: #{tpu_custom_call.1} parent=11 // pred_check
          %p298 = pneg %p215
        $region42: #{tpu_custom_call.1} parent=11 // pred_check_branch
          %300 = sbr.rel (%p298) target = $region44
        $region43: #{tpu_custom_call.1} parent=11 // pred_region
          _
        $region44: #{tpu_custom_call.1} parent=11 // pred_fallthru
          _
        // Predicated region
        $region45: #{tpu_custom_call.1} parent=11 // pred_check
          %p301 = pneg %p236
        $region46: #{tpu_custom_call.1} parent=11 // pred_check_branch
          %303 = sbr.rel (%p301) target = $region48
        $region47: #{tpu_custom_call.1} parent=11 // pred_region
          _
        $region48: #{tpu_custom_call.1} parent=11 // pred_fallthru
          _
      $region12: #{tpu_custom_call.1} parent=5 // pred_fallthru
        _
      %p304 = scmp.lt.s32.totalorder %s21, 2
      // Predicated region
      $region49: #{tpu_custom_call.1} parent=5 // pred_check
        %p305 = pneg %p304
      $region50: #{tpu_custom_call.1} parent=5 // pred_check_branch
        %307 = sbr.rel (%p305) target = $region52
      $region51: #{tpu_custom_call.1} parent=5 // pred_region
        // Predicated region
        $region53: #{tpu_custom_call.1} parent=51 // pred_check
          %p308 = pneg %p41
        $region54: #{tpu_custom_call.1} parent=51 // pred_check_branch
          %310 = sbr.rel (%p308) target = $region56
        $region55: #{tpu_custom_call.1} parent=51 // pred_region
          %s311 = sand.u32 %s31, 1
          %s312 = sand.u32 %s31, 1
          %s313 = smul.addr %s312, 64
          %s314 = scalar_lea.vmem [#allocation4], %s313
          %s315 = smul.u32 4, %s21
          %s316 = smul.addr %s315, 8
          %s317 = scalar_lea.vmem %s1, %s316
          // Predicated region
          $region57: #{tpu_custom_call.1} parent=55 // pred_check
            _
          $region58: #{tpu_custom_call.1} parent=55 // pred_check_branch
            %319 = sbr.rel (0) target = $region60
          $region59: #{tpu_custom_call.1} parent=55 // pred_region
            // Predicated region
            $region61: #{tpu_custom_call.1} parent=59 // pred_check
              _
            $region62: #{tpu_custom_call.1} parent=59 // pred_check_branch
              %321 = sbr.rel (0) target = $region64
            $region63: #{tpu_custom_call.1} parent=59 // pred_region
              loop: start=0, step=1, limit=1
              $region65: #{tpu_custom_call.1} parent=63 // loop_pre_header
                _
              $region66: #{tpu_custom_call.1} parent=63 // loop_header
                %s323 = sphi 0, %s327
                %p324 = scmp.ge.s32.totalorder %s323, 1
                %s328 = sphi %s317, %s317
                %s329 = sphi %s314, %s314
              $region67: #{tpu_custom_call.1} parent=63 // loop_header_branch
                %326 = sbr.rel (%p324) target = $region71
              $region68: #{tpu_custom_call.1} parent=63 // loop_body
                %v330 = vld [vmem:[%s328] sm:$0xff]
                %331 = vst [vmem:[%s329] sm:$0xff] %v330
                %v332 = vld [vmem:[%s328 + $0x8] sm:$0xff]
                %333 = vst [vmem:[%s329 + $0x8] sm:$0xff] %v332
                %v334 = vld [vmem:[%s328 + $0x10] sm:$0xff]
                %335 = vst [vmem:[%s329 + $0x10] sm:$0xff] %v334
                %v336 = vld [vmem:[%s328 + $0x18] sm:$0xff]
                %337 = vst [vmem:[%s329 + $0x18] sm:$0xff] %v336
                %v338 = vld [vmem:[%s328 + $0x40] sm:$0xff]
                %339 = vst [vmem:[%s329 + $0x20] sm:$0xff] %v338
                %v340 = vld [vmem:[%s328 + $0x48] sm:$0xff]
                %341 = vst [vmem:[%s329 + $0x28] sm:$0xff] %v340
                %v342 = vld [vmem:[%s328 + $0x50] sm:$0xff]
                %343 = vst [vmem:[%s329 + $0x30] sm:$0xff] %v342
                %v344 = vld [vmem:[%s328 + $0x58] sm:$0xff]
                %345 = vst [vmem:[%s329 + $0x38] sm:$0xff] %v344
              $region69: #{tpu_custom_call.1} parent=63 // loop_footer
                %s327 = sadd.s32 1, %s323
              $region70: #{tpu_custom_call.1} parent=63 // loop_footer_branch
                %322 = sbr.rel target = $region66
              $region71: #{tpu_custom_call.1} parent=63 // loop_exit
                _
            $region64: #{tpu_custom_call.1} parent=59 // pred_fallthru
              _
            // Predicated region
            $region72: #{tpu_custom_call.1} parent=59 // pred_check
              _
            $region73: #{tpu_custom_call.1} parent=59 // pred_check_branch
              %347 = sbr.rel target = $region75
            $region74: #{tpu_custom_call.1} parent=59 // pred_region
              _
            $region75: #{tpu_custom_call.1} parent=59 // pred_fallthru
              _
          $region60: #{tpu_custom_call.1} parent=55 // pred_fallthru
            _
          %348 = vnop
        $region56: #{tpu_custom_call.1} parent=51 // pred_fallthru
          _
      $region52: #{tpu_custom_call.1} parent=5 // pred_fallthru
        _
      %p349 = scmp.le.s32.totalorder 1, %s21
      %p350 = scmp.lt.s32.totalorder %s21, 3
      %p351 = pnand %p349, %p350
      %p352 = pneg %p351
      // Predicated region
      $region76: #{tpu_custom_call.1} parent=5 // pred_check
        _
      $region77: #{tpu_custom_call.1} parent=5 // pred_check_branch
        %354 = sbr.rel (%p351) target = $region79
      $region78: #{tpu_custom_call.1} parent=5 // pred_region
        %s355 = ssub.s32 %s21, 1
        %s356 = sand.u32 %s34, 1
        %s357 = sand.u32 %s34, 1
        %s358 = smul.addr %s357, 64
        %s359 = scalar_lea.vmem [#allocation4], %s358
        // Predicated region
        $region80: #{tpu_custom_call.1} parent=78 // pred_check
          %p360 = pneg %p47
        $region81: #{tpu_custom_call.1} parent=78 // pred_check_branch
          %362 = sbr.rel (%p360) target = $region83
        $region82: #{tpu_custom_call.1} parent=78 // pred_region
          _
        $region83: #{tpu_custom_call.1} parent=78 // pred_fallthru
          _
        %s363 = sand.u32 %s34, 1
        %s364 = sand.u32 %s34, 1
        %s365 = smul.addr %s364, 64
        %s366 = scalar_lea.vmem [#allocation4], %s365
        %p367 = pneg %p47
        %p368 = pneg %p44
        %p369 = pneg %p68
        %p370 = pneg %p65
        %p371 = pneg %p89
        %p372 = pneg %p86
        %p373 = pneg %p110
        %p374 = pneg %p107
        %p375 = pneg %p131
        %p376 = pneg %p128
        %p377 = pneg %p152
        %p378 = pneg %p149
        %p379 = pneg %p173
        %p380 = pneg %p170
        %p381 = pneg %p194
        %p382 = pneg %p191
        %p383 = pneg %p215
        %p384 = pneg %p212
        %p385 = pneg %p236
        %p386 = pneg %p233
        %p387 = pneg %p262
        %p388 = pneg %p259
        %s389 = sand.u32 %s249, 1
        %s390 = scalar_lea.sflag [#allocation6], %s389
        %s391 = sand.u32 %s249, 1
        %s392 = smul.addr %s391, 64
        %s393 = scalar_lea.vmem [#allocation5], %s392
        %s394 = smul.u32 4, %s26
        %s395 = smul.u32 4, %s26
        %s397 = sld [smem:[#allocation3]]
        %v398 = vld [vmem:[%s359] sm:$0xff]
        %v399 = vld [vmem:[%s359 + $0x8] sm:$0xff]
        %v400 = vld [vmem:[%s359 + $0x10] sm:$0xff]
        %v401 = vld [vmem:[%s359 + $0x18] sm:$0xff]
        %v402 = vld [vmem:[%s359 + $0x20] sm:$0xff]
        %v403 = vld [vmem:[%s359 + $0x28] sm:$0xff]
        %v404 = vld [vmem:[%s359 + $0x30] sm:$0xff]
        %v405 = vld [vmem:[%s359 + $0x38] sm:$0xff]
        %v406 = vpack.c.bf16 %v402, %v398
        %v407 = vpack.c.bf16 %v403, %v399
        %v408 = vpack.c.bf16 %v404, %v400
        %v409 = vpack.c.bf16 %v405, %v401
        %v410 = vld [vmem:[%s2] sm:$0xf]
        %v411 = vld [vmem:[%s2 + $0x4] sm:$0xf]
        %v412 = vld [vmem:[%s2 + $0x8] sm:$0xf]
        %v413 = vld [vmem:[%s2 + $0xc] sm:$0xf]
        %v414 = vld [vmem:[%s3] sm:$0xff]
        %v415 = vld [vmem:[%s3 + $0x8] sm:$0xff]
        %v416 = vld [vmem:[%s3 + $0x10] sm:$0xff]
        %v417 = vld [vmem:[%s3 + $0x18] sm:$0xff]
        %v418 = vstv %s397
        %v419 = vmul.f32 %v418, %v414
        %v420 = vmul.f32 %v418, %v415
        %v421 = vmul.f32 %v418, %v416
        %v422 = vmul.f32 %v418, %v417
        %v423 = vld [vmem:[%s4] sm:$0xff]
        %v424 = vld [vmem:[%s4 + $0x8] sm:$0xff]
        %v425 = vld [vmem:[%s4 + $0x10] sm:$0xff]
        %v426 = vld [vmem:[%s4 + $0x18] sm:$0xff]
        %v427 = vadd.f32 %v419, %v423
        %v428 = vadd.f32 %v420, %v424
        %v429 = vadd.f32 %v421, %v425
        %v430 = vadd.f32 %v422, %v426
        %432 = vset.pattern.permute.xlu0 0
        %433 = vperm.xlu0 %432, %v427
        %v434 = vpop.permute.xlu0 %433
        %437 = vset.pattern.permute.xlu0 0
        %438 = vperm.xlu0 %437, %v428
        %v439 = vpop.permute.xlu0 %438
        %442 = vset.pattern.permute.xlu0 0
        %443 = vperm.xlu0 %442, %v429
        %v444 = vpop.permute.xlu0 %443
        %447 = vset.pattern.permute.xlu0 0
        %448 = vperm.xlu0 %447, %v430
        %v449 = vpop.permute.xlu0 %448
        %v455 = vunpack.c.l.b16 %v410
        %v456 = vunpack.c.l.b16 %v411
        %v457 = vunpack.c.l.b16 %v412
        %v458 = vunpack.c.l.b16 %v413
        %v459 = vpack.c.b16 %v456, %v455
        %v460 = vpack.c.b16 %v458, %v457
        %vm461 = vcmask 130048
        %v463 = vsel %vm461, %v459, 0
        %v466 = vsel %vm461, %v460, 0
        %468 = vmatprep.subr.bf16.mxu0 0
        %469 = vmatpush1.bf16.msra.mxu0 0
        %470 = vmatprep.subr.bf16.mxu0 0
        %471 = vmatpush1.bf16.msra.mxu0 0
        %472 = vmatprep.subr.bf16.mxu0 0
        %473 = vmatpush1.bf16.msra.mxu0 0
        %474 = vmatprep.subr.bf16.mxu0 0
        %475 = vmatpush1.bf16.msra.mxu0 0
        %476 = vmatprep.subr.bf16.mxu0 0
        %477 = vmatpush1.bf16.msra.mxu0 0
        %478 = vmatprep.subr.bf16.mxu0 0
        %479 = vmatpush1.bf16.msra.mxu0 0
        %480 = vmatprep.subr.bf16.mxu0 0
        %481 = vmatpush1.bf16.msra.mxu0 0
        %482 = vmatprep.subr.bf16.mxu0 %v407
        %483 = vmatpush1.bf16.msra.mxu0 %v406
        %484 = vmatprep.subr.bf16.mxu0 0
        %485 = vmatpush2.bf16.msra.mxu0 0
        %486 = vmatprep.subr.bf16.mxu0 0
        %487 = vmatpush2.bf16.msra.mxu0 0
        %488 = vmatprep.subr.bf16.mxu0 0
        %489 = vmatpush2.bf16.msra.mxu0 0
        %490 = vmatprep.subr.bf16.mxu0 0
        %491 = vmatpush2.bf16.msra.mxu0 0
        %492 = vmatprep.subr.bf16.mxu0 0
        %493 = vmatpush2.bf16.msra.mxu0 0
        %494 = vmatprep.subr.bf16.mxu0 0
        %495 = vmatpush2.bf16.msra.mxu0 0
        %496 = vmatprep.subr.bf16.mxu0 0
        %497 = vmatpush2.bf16.msra.mxu0 0
        %498 = vmatprep.subr.bf16.mxu0 0
        %499 = vmatpush2.bf16.msra.mxu0 0
        %500 = vmatprep.mubr.bf16.mxu0 0
        %501 = vmatmul.mubr.bf16.gmra.mxu0 %v463
        %v502 = vpop.f32.mrf.mxu0
        %v503 = vadd.f32 %v434, %v502
        %v504 = vpop.f32.mrf.mxu0
        %v505 = vadd.f32 %v434, %v504
        %v506 = vpop.f32.mrf.mxu0
        %v507 = vadd.f32 %v439, %v506
        %v508 = vpop.f32.mrf.mxu0
        %v509 = vadd.f32 %v439, %v508
        %510 = vmatprep.mubr.bf16.mxu0 0
        %511 = vmatmul.mubr.bf16.gmra.mxu0 %v466
        %v512 = vpop.f32.mrf.mxu0
        %v513 = vadd.f32 %v444, %v512
        %v514 = vpop.f32.mrf.mxu0
        %v515 = vadd.f32 %v444, %v514
        %v516 = vpop.f32.mrf.mxu0
        %v517 = vadd.f32 %v449, %v516
        %v518 = vpop.f32.mrf.mxu0
        %v519 = vadd.f32 %v449, %v518
        %520 = vdwg.mxu0
        %521 = vmatprep.subr.bf16.mxu0 0
        %522 = vmatpush1.bf16.msra.mxu0 0
        %523 = vmatprep.subr.bf16.mxu0 0
        %524 = vmatpush1.bf16.msra.mxu0 0
        %525 = vmatprep.subr.bf16.mxu0 0
        %526 = vmatpush1.bf16.msra.mxu0 0
        %527 = vmatprep.subr.bf16.mxu0 0
        %528 = vmatpush1.bf16.msra.mxu0 0
        %529 = vmatprep.subr.bf16.mxu0 0
        %530 = vmatpush1.bf16.msra.mxu0 0
        %531 = vmatprep.subr.bf16.mxu0 0
        %532 = vmatpush1.bf16.msra.mxu0 0
        %533 = vmatprep.subr.bf16.mxu0 0
        %534 = vmatpush1.bf16.msra.mxu0 0
        %535 = vmatprep.subr.bf16.mxu0 %v409
        %536 = vmatpush1.bf16.msra.mxu0 %v408
        %537 = vmatprep.subr.bf16.mxu0 0
        %538 = vmatpush2.bf16.msra.mxu0 0
        %539 = vmatprep.subr.bf16.mxu0 0
        %540 = vmatpush2.bf16.msra.mxu0 0
        %541 = vmatprep.subr.bf16.mxu0 0
        %542 = vmatpush2.bf16.msra.mxu0 0
        %543 = vmatprep.subr.bf16.mxu0 0
        %544 = vmatpush2.bf16.msra.mxu0 0
        %545 = vmatprep.subr.bf16.mxu0 0
        %546 = vmatpush2.bf16.msra.mxu0 0
        %547 = vmatprep.subr.bf16.mxu0 0
        %548 = vmatpush2.bf16.msra.mxu0 0
        %549 = vmatprep.subr.bf16.mxu0 0
        %550 = vmatpush2.bf16.msra.mxu0 0
        %551 = vmatprep.subr.bf16.mxu0 0
        %552 = vmatpush2.bf16.msra.mxu0 0
        %553 = vmatprep.mubr.bf16.mxu0 0
        %554 = vmatmul.mubr.bf16.gmra.mxu0 %v463
        %v555 = vpop.f32.mrf.mxu0
        %v556 = vadd.f32 %v434, %v555
        %v557 = vpop.f32.mrf.mxu0
        %v558 = vadd.f32 %v434, %v557
        %v559 = vpop.f32.mrf.mxu0
        %v560 = vadd.f32 %v439, %v559
        %v561 = vpop.f32.mrf.mxu0
        %v562 = vadd.f32 %v439, %v561
        %563 = vmatprep.mubr.bf16.mxu0 0
        %564 = vmatmul.mubr.bf16.gmra.mxu0 %v466
        %v565 = vpop.f32.mrf.mxu0
        %v566 = vadd.f32 %v444, %v565
        %v567 = vpop.f32.mrf.mxu0
        %v568 = vadd.f32 %v444, %v567
        %v569 = vpop.f32.mrf.mxu0
        %v570 = vadd.f32 %v449, %v569
        %v571 = vpop.f32.mrf.mxu0
        %v572 = vadd.f32 %v449, %v571
        %573 = vdwg.mxu0
        %v574 = vmax.f32 %v503, 0.0
        %v575 = vmax.f32 %v505, 0.0
        %v576 = vmax.f32 %v556, 0.0
        %v577 = vmax.f32 %v558, 0.0
        %v578 = vmax.f32 %v507, 0.0
        %v579 = vmax.f32 %v509, 0.0
        %v580 = vmax.f32 %v560, 0.0
        %v581 = vmax.f32 %v562, 0.0
        %v582 = vmax.f32 %v513, 0.0
        %v583 = vmax.f32 %v515, 0.0
        %v584 = vmax.f32 %v566, 0.0
        %v585 = vmax.f32 %v568, 0.0
        %v586 = vmax.f32 %v517, 0.0
        %v587 = vmax.f32 %v519, 0.0
        %v588 = vmax.f32 %v570, 0.0
        %v589 = vmax.f32 %v572, 0.0
        %v590 = vand.u32 2147483647, %v503
        %v591 = vand.u32 2147483647, %v505
        %v592 = vand.u32 2147483647, %v556
        %v593 = vand.u32 2147483647, %v558
        %v594 = vand.u32 2147483647, %v507
        %v595 = vand.u32 2147483647, %v509
        %v596 = vand.u32 2147483647, %v560
        %v597 = vand.u32 2147483647, %v562
        %v598 = vand.u32 2147483647, %v513
        %v599 = vand.u32 2147483647, %v515
        %v600 = vand.u32 2147483647, %v566
        %v601 = vand.u32 2147483647, %v568
        %v602 = vand.u32 2147483647, %v517
        %v603 = vand.u32 2147483647, %v519
        %v604 = vand.u32 2147483647, %v570
        %v605 = vand.u32 2147483647, %v572
        %v606 = vsub.f32 0.0, %v590
        %v607 = vsub.f32 0.0, %v591
        %v608 = vsub.f32 0.0, %v592
        %v609 = vsub.f32 0.0, %v593
        %v610 = vsub.f32 0.0, %v594
        %v611 = vsub.f32 0.0, %v595
        %v612 = vsub.f32 0.0, %v596
        %v613 = vsub.f32 0.0, %v597
        %v614 = vsub.f32 0.0, %v598
        %v615 = vsub.f32 0.0, %v599
        %v616 = vsub.f32 0.0, %v600
        %v617 = vsub.f32 0.0, %v601
        %v618 = vsub.f32 0.0, %v602
        %v619 = vsub.f32 0.0, %v603
        %v620 = vsub.f32 0.0, %v604
        %v621 = vsub.f32 0.0, %v605
        %v622 = vmul.f32 %v606, 1.442695
        %v623 = vpow.pop %v622
        %v624 = vmul.f32 %v607, 1.442695
        %v625 = vpow.pop %v624
        %v626 = vmul.f32 %v608, 1.442695
        %v627 = vpow.pop %v626
        %v628 = vmul.f32 %v609, 1.442695
        %v629 = vpow.pop %v628
        %v630 = vmul.f32 %v610, 1.442695
        %v631 = vpow.pop %v630
        %v632 = vmul.f32 %v611, 1.442695
        %v633 = vpow.pop %v632
        %v634 = vmul.f32 %v612, 1.442695
        %v635 = vpow.pop %v634
        %v636 = vmul.f32 %v613, 1.442695
        %v637 = vpow.pop %v636
        %v638 = vmul.f32 %v614, 1.442695
        %v639 = vpow.pop %v638
        %v640 = vmul.f32 %v615, 1.442695
        %v641 = vpow.pop %v640
        %v642 = vmul.f32 %v616, 1.442695
        %v643 = vpow.pop %v642
        %v644 = vmul.f32 %v617, 1.442695
        %v645 = vpow.pop %v644
        %v646 = vmul.f32 %v618, 1.442695
        %v647 = vpow.pop %v646
        %v648 = vmul.f32 %v619, 1.442695
        %v649 = vpow.pop %v648
        %v650 = vmul.f32 %v620, 1.442695
        %v651 = vpow.pop %v650
        %v652 = vmul.f32 %v621, 1.442695
        %v653 = vpow.pop %v652
        %v654 = vadd.f32 %v623, 1.0
        %v655 = vlog2.pop %v654
        %v656 = vmul.f32 %v655, 0.6931472
        %v657 = vmul.f32 -0.5, %v623
        %v658 = vadd.f32 %v657, 1.0
        %v659 = vmul.f32 %v658, %v623
        %v660 = vand.u32 2147483647, %v623
        %vm661 = vcmp.lt.f32.partialorder %v660, 0.0004427343
        %v662 = vsel %vm661, %v659, %v656
        %v663 = vadd.f32 %v625, 1.0
        %v664 = vlog2.pop %v663
        %v665 = vmul.f32 %v664, 0.6931472
        %v666 = vmul.f32 -0.5, %v625
        %v667 = vadd.f32 %v666, 1.0
        %v668 = vmul.f32 %v667, %v625
        %v669 = vand.u32 2147483647, %v625
        %vm670 = vcmp.lt.f32.partialorder %v669, 0.0004427343
        %v671 = vsel %vm670, %v668, %v665
        %v672 = vadd.f32 %v627, 1.0
        %v673 = vlog2.pop %v672
        %v674 = vmul.f32 %v673, 0.6931472
        %v675 = vmul.f32 -0.5, %v627
        %v676 = vadd.f32 %v675, 1.0
        %v677 = vmul.f32 %v676, %v627
        %v678 = vand.u32 2147483647, %v627
        %vm679 = vcmp.lt.f32.partialorder %v678, 0.0004427343
        %v680 = vsel %vm679, %v677, %v674
        %v681 = vadd.f32 %v629, 1.0
        %v682 = vlog2.pop %v681
        %v683 = vmul.f32 %v682, 0.6931472
        %v684 = vmul.f32 -0.5, %v629
        %v685 = vadd.f32 %v684, 1.0
        %v686 = vmul.f32 %v685, %v629
        %v687 = vand.u32 2147483647, %v629
        %vm688 = vcmp.lt.f32.partialorder %v687, 0.0004427343
        %v689 = vsel %vm688, %v686, %v683
        %v690 = vadd.f32 %v631, 1.0
        %v691 = vlog2.pop %v690
        %v692 = vmul.f32 %v691, 0.6931472
        %v693 = vmul.f32 -0.5, %v631
        %v694 = vadd.f32 %v693, 1.0
        %v695 = vmul.f32 %v694, %v631
        %v696 = vand.u32 2147483647, %v631
        %vm697 = vcmp.lt.f32.partialorder %v696, 0.0004427343
        %v698 = vsel %vm697, %v695, %v692
        %v699 = vadd.f32 %v633, 1.0
        %v700 = vlog2.pop %v699
        %v701 = vmul.f32 %v700, 0.6931472
        %v702 = vmul.f32 -0.5, %v633
        %v703 = vadd.f32 %v702, 1.0
        %v704 = vmul.f32 %v703, %v633
        %v705 = vand.u32 2147483647, %v633
        %vm706 = vcmp.lt.f32.partialorder %v705, 0.0004427343
        %v707 = vsel %vm706, %v704, %v701
        %v708 = vadd.f32 %v635, 1.0
        %v709 = vlog2.pop %v708
        %v710 = vmul.f32 %v709, 0.6931472
        %v711 = vmul.f32 -0.5, %v635
        %v712 = vadd.f32 %v711, 1.0
        %v713 = vmul.f32 %v712, %v635
        %v714 = vand.u32 2147483647, %v635
        %vm715 = vcmp.lt.f32.partialorder %v714, 0.0004427343
        %v716 = vsel %vm715, %v713, %v710
        %v717 = vadd.f32 %v637, 1.0
        %v718 = vlog2.pop %v717
        %v719 = vmul.f32 %v718, 0.6931472
        %v720 = vmul.f32 -0.5, %v637
        %v721 = vadd.f32 %v720, 1.0
        %v722 = vmul.f32 %v721, %v637
        %v723 = vand.u32 2147483647, %v637
        %vm724 = vcmp.lt.f32.partialorder %v723, 0.0004427343
        %v725 = vsel %vm724, %v722, %v719
        %v726 = vadd.f32 %v639, 1.0
        %v727 = vlog2.pop %v726
        %v728 = vmul.f32 %v727, 0.6931472
        %v729 = vmul.f32 -0.5, %v639
        %v730 = vadd.f32 %v729, 1.0
        %v731 = vmul.f32 %v730, %v639
        %v732 = vand.u32 2147483647, %v639
        %vm733 = vcmp.lt.f32.partialorder %v732, 0.0004427343
        %v734 = vsel %vm733, %v731, %v728
        %v735 = vadd.f32 %v641, 1.0
        %v736 = vlog2.pop %v735
        %v737 = vmul.f32 %v736, 0.6931472
        %v738 = vmul.f32 -0.5, %v641
        %v739 = vadd.f32 %v738, 1.0
        %v740 = vmul.f32 %v739, %v641
        %v741 = vand.u32 2147483647, %v641
        %vm742 = vcmp.lt.f32.partialorder %v741, 0.0004427343
        %v743 = vsel %vm742, %v740, %v737
        %v744 = vadd.f32 %v643, 1.0
        %v745 = vlog2.pop %v744
        %v746 = vmul.f32 %v745, 0.6931472
        %v747 = vmul.f32 -0.5, %v643
        %v748 = vadd.f32 %v747, 1.0
        %v749 = vmul.f32 %v748, %v643
        %v750 = vand.u32 2147483647, %v643
        %vm751 = vcmp.lt.f32.partialorder %v750, 0.0004427343
        %v752 = vsel %vm751, %v749, %v746
        %v753 = vadd.f32 %v645, 1.0
        %v754 = vlog2.pop %v753
        %v755 = vmul.f32 %v754, 0.6931472
        %v756 = vmul.f32 -0.5, %v645
        %v757 = vadd.f32 %v756, 1.0
        %v758 = vmul.f32 %v757, %v645
        %v759 = vand.u32 2147483647, %v645
        %vm760 = vcmp.lt.f32.partialorder %v759, 0.0004427343
        %v761 = vsel %vm760, %v758, %v755
        %v762 = vadd.f32 %v647, 1.0
        %v763 = vlog2.pop %v762
        %v764 = vmul.f32 %v763, 0.6931472
        %v765 = vmul.f32 -0.5, %v647
        %v766 = vadd.f32 %v765, 1.0
        %v767 = vmul.f32 %v766, %v647
        %v768 = vand.u32 2147483647, %v647
        %vm769 = vcmp.lt.f32.partialorder %v768, 0.0004427343
        %v770 = vsel %vm769, %v767, %v764
        %v771 = vadd.f32 %v649, 1.0
        %v772 = vlog2.pop %v771
        %v773 = vmul.f32 %v772, 0.6931472
        %v774 = vmul.f32 -0.5, %v649
        %v775 = vadd.f32 %v774, 1.0
        %v776 = vmul.f32 %v775, %v649
        %v777 = vand.u32 2147483647, %v649
        %vm778 = vcmp.lt.f32.partialorder %v777, 0.0004427343
        %v779 = vsel %vm778, %v776, %v773
        %v780 = vadd.f32 %v651, 1.0
        %v781 = vlog2.pop %v780
        %v782 = vmul.f32 %v781, 0.6931472
        %v783 = vmul.f32 -0.5, %v651
        %v784 = vadd.f32 %v783, 1.0
        %v785 = vmul.f32 %v784, %v651
        %v786 = vand.u32 2147483647, %v651
        %vm787 = vcmp.lt.f32.partialorder %v786, 0.0004427343
        %v788 = vsel %vm787, %v785, %v782
        %v789 = vadd.f32 %v653, 1.0
        %v790 = vlog2.pop %v789
        %v791 = vmul.f32 %v790, 0.6931472
        %v792 = vmul.f32 -0.5, %v653
        %v793 = vadd.f32 %v792, 1.0
        %v794 = vmul.f32 %v793, %v653
        %v795 = vand.u32 2147483647, %v653
        %vm796 = vcmp.lt.f32.partialorder %v795, 0.0004427343
        %v797 = vsel %vm796, %v794, %v791
        %v798 = vadd.f32 %v574, %v662
        %v799 = vadd.f32 %v575, %v671
        %v800 = vadd.f32 %v576, %v680
        %v801 = vadd.f32 %v577, %v689
        %v802 = vadd.f32 %v578, %v698
        %v803 = vadd.f32 %v579, %v707
        %v804 = vadd.f32 %v580, %v716
        %v805 = vadd.f32 %v581, %v725
        %v806 = vadd.f32 %v582, %v734
        %v807 = vadd.f32 %v583, %v743
        %v808 = vadd.f32 %v584, %v752
        %v809 = vadd.f32 %v585, %v761
        %v810 = vadd.f32 %v586, %v770
        %v811 = vadd.f32 %v587, %v779
        %v812 = vadd.f32 %v588, %v788
        %v813 = vadd.f32 %v589, %v797
        %v814 = vld [vmem:[%s5] sm:$0xf]
        %v815 = vld [vmem:[%s5 + $0x4] sm:$0xf]
        %v816 = vld [vmem:[%s5 + $0x8] sm:$0xf]
        %v817 = vld [vmem:[%s5 + $0xc] sm:$0xf]
        %v818 = vpack.c.bf16 %v802, %v798
        %v819 = vpack.c.bf16 %v803, %v799
        %v820 = vpack.c.bf16 %v804, %v800
        %v821 = vpack.c.bf16 %v805, %v801
        %v822 = vpack.c.bf16 %v810, %v806
        %v823 = vpack.c.bf16 %v811, %v807
        %v824 = vpack.c.bf16 %v812, %v808
        %v825 = vpack.c.bf16 %v813, %v809
        %v826 = vld [vmem:[%s6] sm:$0xff]
        %v827 = vld [vmem:[%s6 + $0x8] sm:$0xff]
        %v828 = vld [vmem:[%s6 + $0x10] sm:$0xff]
        %v829 = vld [vmem:[%s6 + $0x18] sm:$0xff]
        %v830 = vmul.f32 %v418, %v826
        %v831 = vmul.f32 %v418, %v827
        %v832 = vmul.f32 %v418, %v828
        %v833 = vmul.f32 %v418, %v829
        %v834 = vld [vmem:[%s7] sm:$0xff]
        %v835 = vld [vmem:[%s7 + $0x8] sm:$0xff]
        %v836 = vld [vmem:[%s7 + $0x10] sm:$0xff]
        %v837 = vld [vmem:[%s7 + $0x18] sm:$0xff]
        %v838 = vadd.f32 %v830, %v834
        %v839 = vadd.f32 %v831, %v835
        %v840 = vadd.f32 %v832, %v836
        %v841 = vadd.f32 %v833, %v837
        %843 = vset.pattern.permute.xlu0 0
        %844 = vperm.xlu0 %843, %v838
        %v845 = vpop.permute.xlu0 %844
        %848 = vset.pattern.permute.xlu0 0
        %849 = vperm.xlu0 %848, %v839
        %v850 = vpop.permute.xlu0 %849
        %853 = vset.pattern.permute.xlu0 0
        %854 = vperm.xlu0 %853, %v840
        %v855 = vpop.permute.xlu0 %854
        %858 = vset.pattern.permute.xlu0 0
        %859 = vperm.xlu0 %858, %v841
        %v860 = vpop.permute.xlu0 %859
        %v866 = vunpack.c.l.b16 %v814
        %v867 = vunpack.c.l.b16 %v815
        %v868 = vunpack.c.l.b16 %v816
        %v869 = vunpack.c.l.b16 %v817
        %v870 = vpack.c.b16 %v867, %v866
        %v871 = vpack.c.b16 %v869, %v868
        %vm872 = vcmask 261120
        %v874 = vsel %vm872, %v870, 0
        %v877 = vsel %vm872, %v871, 0
        %879 = vmatprep.subr.bf16.mxu0 0
        %880 = vmatpush1.bf16.msra.mxu0 0
        %881 = vmatprep.subr.bf16.mxu0 0
        %882 = vmatpush1.bf16.msra.mxu0 0
        %883 = vmatprep.subr.bf16.mxu0 0
        %884 = vmatpush1.bf16.msra.mxu0 0
        %885 = vmatprep.subr.bf16.mxu0 0
        %886 = vmatpush1.bf16.msra.mxu0 0
        %887 = vmatprep.subr.bf16.mxu0 0
        %888 = vmatpush1.bf16.msra.mxu0 0
        %889 = vmatprep.subr.bf16.mxu0 0
        %890 = vmatpush1.bf16.msra.mxu0 0
        %891 = vmatprep.subr.bf16.mxu0 %v823
        %892 = vmatpush1.bf16.msra.mxu0 %v822
        %893 = vmatprep.subr.bf16.mxu0 %v819
        %894 = vmatpush1.bf16.msra.mxu0 %v818
        %895 = vmatprep.subr.bf16.mxu0 0
        %896 = vmatpush2.bf16.msra.mxu0 0
        %897 = vmatprep.subr.bf16.mxu0 0
        %898 = vmatpush2.bf16.msra.mxu0 0
        %899 = vmatprep.subr.bf16.mxu0 0
        %900 = vmatpush2.bf16.msra.mxu0 0
        %901 = vmatprep.subr.bf16.mxu0 0
        %902 = vmatpush2.bf16.msra.mxu0 0
        %903 = vmatprep.subr.bf16.mxu0 0
        %904 = vmatpush2.bf16.msra.mxu0 0
        %905 = vmatprep.subr.bf16.mxu0 0
        %906 = vmatpush2.bf16.msra.mxu0 0
        %907 = vmatprep.subr.bf16.mxu0 0
        %908 = vmatpush2.bf16.msra.mxu0 0
        %909 = vmatprep.subr.bf16.mxu0 0
        %910 = vmatpush2.bf16.msra.mxu0 0
        %911 = vmatprep.mubr.bf16.mxu0 0
        %912 = vmatmul.mubr.bf16.gmra.mxu0 %v874
        %v913 = vpop.f32.mrf.mxu0
        %v914 = vadd.f32 %v845, %v913
        %v915 = vpop.f32.mrf.mxu0
        %v916 = vadd.f32 %v845, %v915
        %v917 = vpop.f32.mrf.mxu0
        %v918 = vadd.f32 %v850, %v917
        %v919 = vpop.f32.mrf.mxu0
        %v920 = vadd.f32 %v850, %v919
        %921 = vmatprep.mubr.bf16.mxu0 0
        %922 = vmatmul.mubr.bf16.gmra.mxu0 %v877
        %v923 = vpop.f32.mrf.mxu0
        %v924 = vadd.f32 %v855, %v923
        %v925 = vpop.f32.mrf.mxu0
        %v926 = vadd.f32 %v855, %v925
        %v927 = vpop.f32.mrf.mxu0
        %v928 = vadd.f32 %v860, %v927
        %v929 = vpop.f32.mrf.mxu0
        %v930 = vadd.f32 %v860, %v929
        %931 = vdwg.mxu0
        %932 = vmatprep.subr.bf16.mxu0 0
        %933 = vmatpush1.bf16.msra.mxu0 0
        %934 = vmatprep.subr.bf16.mxu0 0
        %935 = vmatpush1.bf16.msra.mxu0 0
        %936 = vmatprep.subr.bf16.mxu0 0
        %937 = vmatpush1.bf16.msra.mxu0 0
        %938 = vmatprep.subr.bf16.mxu0 0
        %939 = vmatpush1.bf16.msra.mxu0 0
        %940 = vmatprep.subr.bf16.mxu0 0
        %941 = vmatpush1.bf16.msra.mxu0 0
        %942 = vmatprep.subr.bf16.mxu0 0
        %943 = vmatpush1.bf16.msra.mxu0 0
        %944 = vmatprep.subr.bf16.mxu0 %v825
        %945 = vmatpush1.bf16.msra.mxu0 %v824
        %946 = vmatprep.subr.bf16.mxu0 %v821
        %947 = vmatpush1.bf16.msra.mxu0 %v820
        %948 = vmatprep.subr.bf16.mxu0 0
        %949 = vmatpush2.bf16.msra.mxu0 0
        %950 = vmatprep.subr.bf16.mxu0 0
        %951 = vmatpush2.bf16.msra.mxu0 0
        %952 = vmatprep.subr.bf16.mxu0 0
        %953 = vmatpush2.bf16.msra.mxu0 0
        %954 = vmatprep.subr.bf16.mxu0 0
        %955 = vmatpush2.bf16.msra.mxu0 0
        %956 = vmatprep.subr.bf16.mxu0 0
        %957 = vmatpush2.bf16.msra.mxu0 0
        %958 = vmatprep.subr.bf16.mxu0 0
        %959 = vmatpush2.bf16.msra.mxu0 0
        %960 = vmatprep.subr.bf16.mxu0 0
        %961 = vmatpush2.bf16.msra.mxu0 0
        %962 = vmatprep.subr.bf16.mxu0 0
        %963 = vmatpush2.bf16.msra.mxu0 0
        %964 = vmatprep.mubr.bf16.mxu0 0
        %965 = vmatmul.mubr.bf16.gmra.mxu0 %v874
        %v966 = vpop.f32.mrf.mxu0
        %v967 = vadd.f32 %v845, %v966
        %v968 = vpop.f32.mrf.mxu0
        %v969 = vadd.f32 %v845, %v968
        %v970 = vpop.f32.mrf.mxu0
        %v971 = vadd.f32 %v850, %v970
        %v972 = vpop.f32.mrf.mxu0
        %v973 = vadd.f32 %v850, %v972
        %974 = vmatprep.mubr.bf16.mxu0 0
        %975 = vmatmul.mubr.bf16.gmra.mxu0 %v877
        %v976 = vpop.f32.mrf.mxu0
        %v977 = vadd.f32 %v855, %v976
        %v978 = vpop.f32.mrf.mxu0
        %v979 = vadd.f32 %v855, %v978
        %v980 = vpop.f32.mrf.mxu0
        %v981 = vadd.f32 %v860, %v980
        %v982 = vpop.f32.mrf.mxu0
        %v983 = vadd.f32 %v860, %v982
        %984 = vdwg.mxu0
        %v985 = vmax.f32 %v914, 0.0
        %v986 = vmax.f32 %v916, 0.0
        %v987 = vmax.f32 %v967, 0.0
        %v988 = vmax.f32 %v969, 0.0
        %v989 = vmax.f32 %v918, 0.0
        %v990 = vmax.f32 %v920, 0.0
        %v991 = vmax.f32 %v971, 0.0
        %v992 = vmax.f32 %v973, 0.0
        %v993 = vmax.f32 %v924, 0.0
        %v994 = vmax.f32 %v926, 0.0
        %v995 = vmax.f32 %v977, 0.0
        %v996 = vmax.f32 %v979, 0.0
        %v997 = vmax.f32 %v928, 0.0
        %v998 = vmax.f32 %v930, 0.0
        %v999 = vmax.f32 %v981, 0.0
        %v1000 = vmax.f32 %v983, 0.0
        %v1001 = vand.u32 2147483647, %v914
        %v1002 = vand.u32 2147483647, %v916
        %v1003 = vand.u32 2147483647, %v967
        %v1004 = vand.u32 2147483647, %v969
        %v1005 = vand.u32 2147483647, %v918
        %v1006 = vand.u32 2147483647, %v920
        %v1007 = vand.u32 2147483647, %v971
        %v1008 = vand.u32 2147483647, %v973
        %v1009 = vand.u32 2147483647, %v924
        %v1010 = vand.u32 2147483647, %v926
        %v1011 = vand.u32 2147483647, %v977
        %v1012 = vand.u32 2147483647, %v979
        %v1013 = vand.u32 2147483647, %v928
        %v1014 = vand.u32 2147483647, %v930
        %v1015 = vand.u32 2147483647, %v981
        %v1016 = vand.u32 2147483647, %v983
        %v1017 = vsub.f32 0.0, %v1001
        %v1018 = vsub.f32 0.0, %v1002
        %v1019 = vsub.f32 0.0, %v1003
        %v1020 = vsub.f32 0.0, %v1004
        %v1021 = vsub.f32 0.0, %v1005
        %v1022 = vsub.f32 0.0, %v1006
        %v1023 = vsub.f32 0.0, %v1007
        %v1024 = vsub.f32 0.0, %v1008
        %v1025 = vsub.f32 0.0, %v1009
        %v1026 = vsub.f32 0.0, %v1010
        %v1027 = vsub.f32 0.0, %v1011
        %v1028 = vsub.f32 0.0, %v1012
        %v1029 = vsub.f32 0.0, %v1013
        %v1030 = vsub.f32 0.0, %v1014
        %v1031 = vsub.f32 0.0, %v1015
        %v1032 = vsub.f32 0.0, %v1016
        %v1033 = vmul.f32 %v1017, 1.442695
        %v1034 = vpow.pop %v1033
        %v1035 = vmul.f32 %v1018, 1.442695
        %v1036 = vpow.pop %v1035
        %v1037 = vmul.f32 %v1019, 1.442695
        %v1038 = vpow.pop %v1037
        %v1039 = vmul.f32 %v1020, 1.442695
        %v1040 = vpow.pop %v1039
        %v1041 = vmul.f32 %v1021, 1.442695
        %v1042 = vpow.pop %v1041
        %v1043 = vmul.f32 %v1022, 1.442695
        %v1044 = vpow.pop %v1043
        %v1045 = vmul.f32 %v1023, 1.442695
        %v1046 = vpow.pop %v1045
        %v1047 = vmul.f32 %v1024, 1.442695
        %v1048 = vpow.pop %v1047
        %v1049 = vmul.f32 %v1025, 1.442695
        %v1050 = vpow.pop %v1049
        %v1051 = vmul.f32 %v1026, 1.442695
        %v1052 = vpow.pop %v1051
        %v1053 = vmul.f32 %v1027, 1.442695
        %v1054 = vpow.pop %v1053
        %v1055 = vmul.f32 %v1028, 1.442695
        %v1056 = vpow.pop %v1055
        %v1057 = vmul.f32 %v1029, 1.442695
        %v1058 = vpow.pop %v1057
        %v1059 = vmul.f32 %v1030, 1.442695
        %v1060 = vpow.pop %v1059
        %v1061 = vmul.f32 %v1031, 1.442695
        %v1062 = vpow.pop %v1061
        %v1063 = vmul.f32 %v1032, 1.442695
        %v1064 = vpow.pop %v1063
        %v1065 = vadd.f32 %v1034, 1.0
        %v1066 = vlog2.pop %v1065
        %v1067 = vmul.f32 %v1066, 0.6931472
        %v1068 = vmul.f32 -0.5, %v1034
        %v1069 = vadd.f32 %v1068, 1.0
        %v1070 = vmul.f32 %v1069, %v1034
        %v1071 = vand.u32 2147483647, %v1034
        %vm1072 = vcmp.lt.f32.partialorder %v1071, 0.0004427343
        %v1073 = vsel %vm1072, %v1070, %v1067
        %v1074 = vadd.f32 %v1036, 1.0
        %v1075 = vlog2.pop %v1074
        %v1076 = vmul.f32 %v1075, 0.6931472
        %v1077 = vmul.f32 -0.5, %v1036
        %v1078 = vadd.f32 %v1077, 1.0
        %v1079 = vmul.f32 %v1078, %v1036
        %v1080 = vand.u32 2147483647, %v1036
        %vm1081 = vcmp.lt.f32.partialorder %v1080, 0.0004427343
        %v1082 = vsel %vm1081, %v1079, %v1076
        %v1083 = vadd.f32 %v1038, 1.0
        %v1084 = vlog2.pop %v1083
        %v1085 = vmul.f32 %v1084, 0.6931472
        %v1086 = vmul.f32 -0.5, %v1038
        %v1087 = vadd.f32 %v1086, 1.0
        %v1088 = vmul.f32 %v1087, %v1038
        %v1089 = vand.u32 2147483647, %v1038
        %vm1090 = vcmp.lt.f32.partialorder %v1089, 0.0004427343
        %v1091 = vsel %vm1090, %v1088, %v1085
        %v1092 = vadd.f32 %v1040, 1.0
        %v1093 = vlog2.pop %v1092
        %v1094 = vmul.f32 %v1093, 0.6931472
        %v1095 = vmul.f32 -0.5, %v1040
        %v1096 = vadd.f32 %v1095, 1.0
        %v1097 = vmul.f32 %v1096, %v1040
        %v1098 = vand.u32 2147483647, %v1040
        %vm1099 = vcmp.lt.f32.partialorder %v1098, 0.0004427343
        %v1100 = vsel %vm1099, %v1097, %v1094
        %v1101 = vadd.f32 %v1042, 1.0
        %v1102 = vlog2.pop %v1101
        %v1103 = vmul.f32 %v1102, 0.6931472
        %v1104 = vmul.f32 -0.5, %v1042
        %v1105 = vadd.f32 %v1104, 1.0
        %v1106 = vmul.f32 %v1105, %v1042
        %v1107 = vand.u32 2147483647, %v1042
        %vm1108 = vcmp.lt.f32.partialorder %v1107, 0.0004427343
        %v1109 = vsel %vm1108, %v1106, %v1103
        %v1110 = vadd.f32 %v1044, 1.0
        %v1111 = vlog2.pop %v1110
        %v1112 = vmul.f32 %v1111, 0.6931472
        %v1113 = vmul.f32 -0.5, %v1044
        %v1114 = vadd.f32 %v1113, 1.0
        %v1115 = vmul.f32 %v1114, %v1044
        %v1116 = vand.u32 2147483647, %v1044
        %vm1117 = vcmp.lt.f32.partialorder %v1116, 0.0004427343
        %v1118 = vsel %vm1117, %v1115, %v1112
        %v1119 = vadd.f32 %v1046, 1.0
        %v1120 = vlog2.pop %v1119
        %v1121 = vmul.f32 %v1120, 0.6931472
        %v1122 = vmul.f32 -0.5, %v1046
        %v1123 = vadd.f32 %v1122, 1.0
        %v1124 = vmul.f32 %v1123, %v1046
        %v1125 = vand.u32 2147483647, %v1046
        %vm1126 = vcmp.lt.f32.partialorder %v1125, 0.0004427343
        %v1127 = vsel %vm1126, %v1124, %v1121
        %v1128 = vadd.f32 %v1048, 1.0
        %v1129 = vlog2.pop %v1128
        %v1130 = vmul.f32 %v1129, 0.6931472
        %v1131 = vmul.f32 -0.5, %v1048
        %v1132 = vadd.f32 %v1131, 1.0
        %v1133 = vmul.f32 %v1132, %v1048
        %v1134 = vand.u32 2147483647, %v1048
        %vm1135 = vcmp.lt.f32.partialorder %v1134, 0.0004427343
        %v1136 = vsel %vm1135, %v1133, %v1130
        %v1137 = vadd.f32 %v1050, 1.0
        %v1138 = vlog2.pop %v1137
        %v1139 = vmul.f32 %v1138, 0.6931472
        %v1140 = vmul.f32 -0.5, %v1050
        %v1141 = vadd.f32 %v1140, 1.0
        %v1142 = vmul.f32 %v1141, %v1050
        %v1143 = vand.u32 2147483647, %v1050
        %vm1144 = vcmp.lt.f32.partialorder %v1143, 0.0004427343
        %v1145 = vsel %vm1144, %v1142, %v1139
        %v1146 = vadd.f32 %v1052, 1.0
        %v1147 = vlog2.pop %v1146
        %v1148 = vmul.f32 %v1147, 0.6931472
        %v1149 = vmul.f32 -0.5, %v1052
        %v1150 = vadd.f32 %v1149, 1.0
        %v1151 = vmul.f32 %v1150, %v1052
        %v1152 = vand.u32 2147483647, %v1052
        %vm1153 = vcmp.lt.f32.partialorder %v1152, 0.0004427343
        %v1154 = vsel %vm1153, %v1151, %v1148
        %v1155 = vadd.f32 %v1054, 1.0
        %v1156 = vlog2.pop %v1155
        %v1157 = vmul.f32 %v1156, 0.6931472
        %v1158 = vmul.f32 -0.5, %v1054
        %v1159 = vadd.f32 %v1158, 1.0
        %v1160 = vmul.f32 %v1159, %v1054
        %v1161 = vand.u32 2147483647, %v1054
        %vm1162 = vcmp.lt.f32.partialorder %v1161, 0.0004427343
        %v1163 = vsel %vm1162, %v1160, %v1157
        %v1164 = vadd.f32 %v1056, 1.0
        %v1165 = vlog2.pop %v1164
        %v1166 = vmul.f32 %v1165, 0.6931472
        %v1167 = vmul.f32 -0.5, %v1056
        %v1168 = vadd.f32 %v1167, 1.0
        %v1169 = vmul.f32 %v1168, %v1056
        %v1170 = vand.u32 2147483647, %v1056
        %vm1171 = vcmp.lt.f32.partialorder %v1170, 0.0004427343
        %v1172 = vsel %vm1171, %v1169, %v1166
        %v1173 = vadd.f32 %v1058, 1.0
        %v1174 = vlog2.pop %v1173
        %v1175 = vmul.f32 %v1174, 0.6931472
        %v1176 = vmul.f32 -0.5, %v1058
        %v1177 = vadd.f32 %v1176, 1.0
        %v1178 = vmul.f32 %v1177, %v1058
        %v1179 = vand.u32 2147483647, %v1058
        %vm1180 = vcmp.lt.f32.partialorder %v1179, 0.0004427343
        %v1181 = vsel %vm1180, %v1178, %v1175
        %v1182 = vadd.f32 %v1060, 1.0
        %v1183 = vlog2.pop %v1182
        %v1184 = vmul.f32 %v1183, 0.6931472
        %v1185 = vmul.f32 -0.5, %v1060
        %v1186 = vadd.f32 %v1185, 1.0
        %v1187 = vmul.f32 %v1186, %v1060
        %v1188 = vand.u32 2147483647, %v1060
        %vm1189 = vcmp.lt.f32.partialorder %v1188, 0.0004427343
        %v1190 = vsel %vm1189, %v1187, %v1184
        %v1191 = vadd.f32 %v1062, 1.0
        %v1192 = vlog2.pop %v1191
        %v1193 = vmul.f32 %v1192, 0.6931472
        %v1194 = vmul.f32 -0.5, %v1062
        %v1195 = vadd.f32 %v1194, 1.0
        %v1196 = vmul.f32 %v1195, %v1062
        %v1197 = vand.u32 2147483647, %v1062
        %vm1198 = vcmp.lt.f32.partialorder %v1197, 0.0004427343
        %v1199 = vsel %vm1198, %v1196, %v1193
        %v1200 = vadd.f32 %v1064, 1.0
        %v1201 = vlog2.pop %v1200
        %v1202 = vmul.f32 %v1201, 0.6931472
        %v1203 = vmul.f32 -0.5, %v1064
        %v1204 = vadd.f32 %v1203, 1.0
        %v1205 = vmul.f32 %v1204, %v1064
        %v1206 = vand.u32 2147483647, %v1064
        %vm1207 = vcmp.lt.f32.partialorder %v1206, 0.0004427343
        %v1208 = vsel %vm1207, %v1205, %v1202
        %v1209 = vadd.f32 %v985, %v1073
        %v1210 = vadd.f32 %v986, %v1082
        %v1211 = vadd.f32 %v987, %v1091
        %v1212 = vadd.f32 %v988, %v1100
        %v1213 = vadd.f32 %v989, %v1109
        %v1214 = vadd.f32 %v990, %v1118
        %v1215 = vadd.f32 %v991, %v1127
        %v1216 = vadd.f32 %v992, %v1136
        %v1217 = vadd.f32 %v993, %v1145
        %v1218 = vadd.f32 %v994, %v1154
        %v1219 = vadd.f32 %v995, %v1163
        %v1220 = vadd.f32 %v996, %v1172
        %v1221 = vadd.f32 %v997, %v1181
        %v1222 = vadd.f32 %v998, %v1190
        %v1223 = vadd.f32 %v999, %v1199
        %v1224 = vadd.f32 %v1000, %v1208
        %v1225 = vld [vmem:[%s8] sm:$0xf]
        %v1226 = vld [vmem:[%s8 + $0x4] sm:$0xf]
        %v1227 = vpack.c.bf16 %v1213, %v1209
        %v1228 = vpack.c.bf16 %v1214, %v1210
        %v1229 = vpack.c.bf16 %v1215, %v1211
        %v1230 = vpack.c.bf16 %v1216, %v1212
        %v1231 = vpack.c.bf16 %v1221, %v1217
        %v1232 = vpack.c.bf16 %v1222, %v1218
        %v1233 = vpack.c.bf16 %v1223, %v1219
        %v1234 = vpack.c.bf16 %v1224, %v1220
        %v1235 = vld [vmem:[%s9] sm:$0xff]
        %v1236 = vld [vmem:[%s9 + $0x8] sm:$0xff]
        %v1237 = vmul.f32 %v418, %v1235
        %v1238 = vmul.f32 %v418, %v1236
        %v1239 = vld [vmem:[%s10] sm:$0xff]
        %v1240 = vld [vmem:[%s10 + $0x8] sm:$0xff]
        %v1241 = vadd.f32 %v1237, %v1239
        %v1242 = vadd.f32 %v1238, %v1240
        %1244 = vset.pattern.permute.xlu0 0
        %1245 = vperm.xlu0 %1244, %v1241
        %v1246 = vpop.permute.xlu0 %1245
        %1249 = vset.pattern.permute.xlu0 0
        %1250 = vperm.xlu0 %1249, %v1242
        %v1251 = vpop.permute.xlu0 %1250
        %v1255 = vunpack.c.l.b16 %v1225
        %v1256 = vunpack.c.l.b16 %v1226
        %v1257 = vpack.c.b16 %v1256, %v1255
        %v1259 = vsel %vm872, %v1257, 0
        %1261 = vmatprep.subr.bf16.mxu0 0
        %1262 = vmatpush1.bf16.msra.mxu0 0
        %1263 = vmatprep.subr.bf16.mxu0 0
        %1264 = vmatpush1.bf16.msra.mxu0 0
        %1265 = vmatprep.subr.bf16.mxu0 0
        %1266 = vmatpush1.bf16.msra.mxu0 0
        %1267 = vmatprep.subr.bf16.mxu0 0
        %1268 = vmatpush1.bf16.msra.mxu0 0
        %1269 = vmatprep.subr.bf16.mxu0 0
        %1270 = vmatpush1.bf16.msra.mxu0 0
        %1271 = vmatprep.subr.bf16.mxu0 0
        %1272 = vmatpush1.bf16.msra.mxu0 0
        %1273 = vmatprep.subr.bf16.mxu0 %v1232
        %1274 = vmatpush1.bf16.msra.mxu0 %v1231
        %1275 = vmatprep.subr.bf16.mxu0 %v1228
        %1276 = vmatpush1.bf16.msra.mxu0 %v1227
        %1277 = vmatprep.subr.bf16.mxu0 0
        %1278 = vmatpush2.bf16.msra.mxu0 0
        %1279 = vmatprep.subr.bf16.mxu0 0
        %1280 = vmatpush2.bf16.msra.mxu0 0
        %1281 = vmatprep.subr.bf16.mxu0 0
        %1282 = vmatpush2.bf16.msra.mxu0 0
        %1283 = vmatprep.subr.bf16.mxu0 0
        %1284 = vmatpush2.bf16.msra.mxu0 0
        %1285 = vmatprep.subr.bf16.mxu0 0
        %1286 = vmatpush2.bf16.msra.mxu0 0
        %1287 = vmatprep.subr.bf16.mxu0 0
        %1288 = vmatpush2.bf16.msra.mxu0 0
        %1289 = vmatprep.subr.bf16.mxu0 0
        %1290 = vmatpush2.bf16.msra.mxu0 0
        %1291 = vmatprep.subr.bf16.mxu0 0
        %1292 = vmatpush2.bf16.msra.mxu0 0
        %1293 = vmatprep.mubr.bf16.mxu0 0
        %1294 = vmatmul.mubr.bf16.gmra.mxu0 %v1259
        %v1295 = vpop.f32.mrf.mxu0
        %v1296 = vadd.f32 %v1246, %v1295
        %v1297 = vpop.f32.mrf.mxu0
        %v1298 = vadd.f32 %v1246, %v1297
        %v1299 = vpop.f32.mrf.mxu0
        %v1300 = vadd.f32 %v1251, %v1299
        %v1301 = vpop.f32.mrf.mxu0
        %v1302 = vadd.f32 %v1251, %v1301
        %1303 = vdwg.mxu0
        %1304 = vmatprep.subr.bf16.mxu0 0
        %1305 = vmatpush1.bf16.msra.mxu0 0
        %1306 = vmatprep.subr.bf16.mxu0 0
        %1307 = vmatpush1.bf16.msra.mxu0 0
        %1308 = vmatprep.subr.bf16.mxu0 0
        %1309 = vmatpush1.bf16.msra.mxu0 0
        %1310 = vmatprep.subr.bf16.mxu0 0
        %1311 = vmatpush1.bf16.msra.mxu0 0
        %1312 = vmatprep.subr.bf16.mxu0 0
        %1313 = vmatpush1.bf16.msra.mxu0 0
        %1314 = vmatprep.subr.bf16.mxu0 0
        %1315 = vmatpush1.bf16.msra.mxu0 0
        %1316 = vmatprep.subr.bf16.mxu0 %v1234
        %1317 = vmatpush1.bf16.msra.mxu0 %v1233
        %1318 = vmatprep.subr.bf16.mxu0 %v1230
        %1319 = vmatpush1.bf16.msra.mxu0 %v1229
        %1320 = vmatprep.subr.bf16.mxu0 0
        %1321 = vmatpush2.bf16.msra.mxu0 0
        %1322 = vmatprep.subr.bf16.mxu0 0
        %1323 = vmatpush2.bf16.msra.mxu0 0
        %1324 = vmatprep.subr.bf16.mxu0 0
        %1325 = vmatpush2.bf16.msra.mxu0 0
        %1326 = vmatprep.subr.bf16.mxu0 0
        %1327 = vmatpush2.bf16.msra.mxu0 0
        %1328 = vmatprep.subr.bf16.mxu0 0
        %1329 = vmatpush2.bf16.msra.mxu0 0
        %1330 = vmatprep.subr.bf16.mxu0 0
        %1331 = vmatpush2.bf16.msra.mxu0 0
        %1332 = vmatprep.subr.bf16.mxu0 0
        %1333 = vmatpush2.bf16.msra.mxu0 0
        %1334 = vmatprep.subr.bf16.mxu0 0
        %1335 = vmatpush2.bf16.msra.mxu0 0
        %1336 = vmatprep.mubr.bf16.mxu0 0
        %1337 = vmatmul.mubr.bf16.gmra.mxu0 %v1259
        %v1338 = vpop.f32.mrf.mxu0
        %v1339 = vadd.f32 %v1246, %v1338
        %v1340 = vpop.f32.mrf.mxu0
        %v1341 = vadd.f32 %v1246, %v1340
        %v1342 = vpop.f32.mrf.mxu0
        %v1343 = vadd.f32 %v1251, %v1342
        %v1344 = vpop.f32.mrf.mxu0
        %v1345 = vadd.f32 %v1251, %v1344
        %1346 = vdwg.mxu0
        %1347 = vst [vmem:[%s393] sm:$0xff] %v1296
        %1348 = vst [vmem:[%s393 + $0x8] sm:$0xff] %v1298
        %1349 = vst [vmem:[%s393 + $0x10] sm:$0xff] %v1339
        %1350 = vst [vmem:[%s393 + $0x18] sm:$0xff] %v1341
        %1351 = vst [vmem:[%s393 + $0x20] sm:$0xff] %v1300
        %1352 = vst [vmem:[%s393 + $0x28] sm:$0xff] %v1302
        %1353 = vst [vmem:[%s393 + $0x30] sm:$0xff] %v1343
        %1354 = vst [vmem:[%s393 + $0x38] sm:$0xff] %v1345
        %s1355 = sand.u32 %s249, 1
        %s1356 = scalar_lea.sflag [#allocation6], %s1355
        %s1357 = sand.u32 %s249, 1
        %s1358 = smul.addr %s1357, 64
        %s1359 = scalar_lea.vmem [#allocation5], %s1358
        // Predicated region
        $region84: #{tpu_custom_call.1} parent=78 // pred_check
          %p1360 = pneg %p259
        $region85: #{tpu_custom_call.1} parent=78 // pred_check_branch
          %1362 = sbr.rel (%p1360) target = $region87
        $region86: #{tpu_custom_call.1} parent=78 // pred_region
          %s1363 = smul.u32 4, %s26
          %s1365 = ssub.s32 1024, 1024
          %1366 = vsyncadd %s1356, %s1365
          %s1367 = smul.addr %s1363, 128
          %s1368 = scalar_lea.hbm %s11, %s1367
          %s1369 = sshll.u32 %s1359, 4
          %s1370 = int_to_ptr.vmem [resolvable:$true] %s1369
          %1375 = dma.vmem_to_hbm [thread:$0]  %s1370, 1024, %s1368, %s1356, 512, 1024, 32
        $region87: #{tpu_custom_call.1} parent=78 // pred_fallthru
          _
      $region79: #{tpu_custom_call.1} parent=5 // pred_fallthru
        _
      %p1376 = scmp.le.s32.totalorder 2, %s21
      // Predicated region
      $region88: #{tpu_custom_call.1} parent=5 // pred_check
        %p1377 = pneg %p1376
      $region89: #{tpu_custom_call.1} parent=5 // pred_check_branch
        %1379 = sbr.rel (%p1377) target = $region91
      $region90: #{tpu_custom_call.1} parent=5 // pred_region
        %s1380 = ssub.s32 %s21, 2
        // Predicated region
        $region92: #{tpu_custom_call.1} parent=90 // pred_check
          %p1381 = pneg %p265
        $region93: #{tpu_custom_call.1} parent=90 // pred_check_branch
          %1383 = sbr.rel (%p1381) target = $region95
        $region94: #{tpu_custom_call.1} parent=90 // pred_region
          %s1384 = sand.u32 %s250, 1
          %s1385 = scalar_lea.sflag [#allocation6], %s1384
          %s1386 = sand.u32 %s250, 1
          %s1387 = smul.addr %s1386, 64
          %s1388 = scalar_lea.vmem [#allocation5], %s1387
          %1389 = dma.done %s1385, 1024
        $region95: #{tpu_custom_call.1} parent=90 // pred_fallthru
          _
      $region91: #{tpu_custom_call.1} parent=5 // pred_fallthru
        _
    $region6: #{tpu_custom_call.1} parent=1 // loop_footer
      %s25 = sadd.s32 1, %s21
    $region7: #{tpu_custom_call.1} parent=1 // loop_footer_branch
      %20 = sbr.rel target = $region3
    $region8: #{tpu_custom_call.1} parent=1 // loop_exit
      _
    %1390 = vsyncpa [#allocation6], 1
    %s1391 = scalar_lea.sflag [#allocation6], 1
    %1392 = vsyncpa %s1391, 1

</llo_original>
